<compile_context>
chip_gen: v5e
topology: v5e:2x2
jax: 0.10.0
libtpu: 0.0.40
codegen_flags: <defaults>
</compile_context>

<pallas_src>
import math
import jax
import jax.numpy as jnp
from jax.experimental import pallas as pl
from jax.experimental.pallas import tpu as pltpu

BN_EPS = 1e-5


# ------------------------------ fused GIN forward kernel ------------------------------
def _gin_fused_kernel(sc_ref,              # SMEM (L+1,) f32: [eps_0 .. eps_{L-1}, gate_bias]
                      adj_ref,             # (N, N)  bf16   A[dst, src]
                      x_ref,               # (N, H)  f32    features zero-padded to H
                      w1_ref, b1_ref,      # (L, H, H) bf16 / (L, 1, H) f32   (BN1 folded in)
                      w2_ref, b2_ref,      # (L, H, H) bf16 / (L, 1, H) f32   (BN2 folded in)
                      lin1w_ref,           # (L, H, H) bf16   lin1 weight split per source layer
                      lin1b_ref,           # (1, H)  f32
                      gatew_ref,           # (1, H)  f32
                      seg_ref, segT_ref,   # (G, N) / (N, G)  f32
                      predw_ref, predb_ref,  # (H, C_pad) f32 / (1, C_pad) f32
                      o_ref):              # (G, C_pad) f32
    num_layers = w1_ref.shape[0]
    a = adj_ref[...]                       # loaded once, resident for all layers
    h = x_ref[...]                         # (N, H) f32
    h1 = jnp.zeros((h.shape[0], lin1w_ref.shape[2]), jnp.float32)

    for l in range(num_layers):            # static, unrolled layer loop
        # GIN "add" aggregation: agg[i] = sum_{(j->i) in E} h[j]  ==  A @ h
        agg = jnp.dot(a, h.astype(jnp.bfloat16), preferred_element_type=jnp.float32)
        z = (1.0 + sc_ref[l]) * h + agg
        # MLP: Linear -> BN(eval, folded) -> ReLU -> Linear -> BN(eval, folded) -> ReLU
        z = jnp.dot(z.astype(jnp.bfloat16), w1_ref[l],
                    preferred_element_type=jnp.float32) + b1_ref[l]
        z = jnp.maximum(z, 0.0)
        z = jnp.dot(z.astype(jnp.bfloat16), w2_ref[l],
                    preferred_element_type=jnp.float32) + b2_ref[l]
        h = jnp.maximum(z, 0.0)            # (N, H) f32 -- this layer's output x_l
        # lin1(cat(xs)) == sum_l x_l @ lin1_w[l*H:(l+1)*H, :]  -> hcat never materializes
        h1 = h1 + jnp.dot(h.astype(jnp.bfloat16), lin1w_ref[l],
                          preferred_element_type=jnp.float32)

    h1 = jnp.maximum(h1 + lin1b_ref[...], 0.0)          # (N, H)

    # Attentional aggregation: per-graph softmax(gate_nn(h1)) weighted sum of h1.
    # Gate logits via a VPU lane reduction (not a 1-column MXU matmul).
    logits = jnp.sum(h1 * gatew_ref[...], axis=-1, keepdims=True) + sc_ref[num_layers]  # (N, 1)
    # Softmax is shift-invariant within each segment, so subtracting the GLOBAL max is exact
    # math and avoids any (G, N)-masked tensor / in-kernel transpose / lane-axis reshape.
    c = jnp.max(logits, axis=0, keepdims=True)           # (1, 1)
    e = jnp.exp(logits - c)                               # (N, 1)
    seg_sum = jnp.dot(seg_ref[...], e, preferred_element_type=jnp.float32)          # (G, 1)
    node_sum = jnp.dot(segT_ref[...], seg_sum, preferred_element_type=jnp.float32)  # (N, 1)
    gate = e / node_sum                                   # every node belongs to exactly 1 graph
    pooled = jnp.dot(seg_ref[...], gate * h1, preferred_element_type=jnp.float32)   # (G, H)
    o_ref[...] = (jnp.dot(pooled, predw_ref[...], preferred_element_type=jnp.float32)
                  + predb_ref[...])


# ------------------------------ host-side parameter folding ------------------------------
def _fold_bn(w, b, gamma, beta, mean, var):
    """Fold eval-mode BatchNorm into the preceding Linear (y = x@W + b)."""
    scale = gamma * jax.lax.rsqrt(var + BN_EPS)           # (1, out)
    return w * scale, (b - mean) * scale + beta


def prepare_operands(params, num_features, hidden, num_layers, num_classes):
    assert num_features <= hidden
    w1s, b1s, w2s, b2s, eps = [], [], [], [], []
    for l, p in enumerate(params["convs"]):
        w1, b1 = _fold_bn(p["w1"], p["b1"], p["bn1_g"], p["bn1_b"], p["bn1_m"], p["bn1_v"])
        w2, b2 = _fold_bn(p["w2"], p["b2"], p["bn2_g"], p["bn2_b"], p["bn2_m"], p["bn2_v"])
        if l == 0:
            # pad layer-0 input dim (num_features -> hidden) with zero rows so all per-layer
            # first-Linear weights stack to a uniform (hidden, hidden)
            w1 = jnp.pad(w1, ((0, hidden - num_features), (0, 0)))
        w1s.append(w1); b1s.append(b1); w2s.append(w2); b2s.append(b2)
        eps.append(jnp.reshape(p["eps"], (1,)))
    head = params["head"]
    c_pad = ((num_classes + 127) // 128) * 128            # lane-dense output store
    ops = dict(
        scalars=jnp.concatenate(eps + [jnp.reshape(head["gate_b"], (1,))]).astype(jnp.float32),
        w1=jnp.stack(w1s).astype(jnp.bfloat16),
        b1=jnp.stack(b1s).astype(jnp.float32),
        w2=jnp.stack(w2s).astype(jnp.bfloat16),
        b2=jnp.stack(b2s).astype(jnp.float32),
        lin1_w=head["lin1_w"].reshape(num_layers, hidden, hidden).astype(jnp.bfloat16),
        lin1_b=head["lin1_b"].astype(jnp.float32),
        gate_w=jnp.transpose(head["gate_w"]).astype(jnp.float32),       # (1, hidden)
        pred_w=jnp.pad(head["pred_w"], ((0, 0), (0, c_pad - num_classes))).astype(jnp.float32),
        pred_b=jnp.pad(head["pred_b"], ((0, 0), (0, c_pad - num_classes))).astype(jnp.float32),
    )
    return ops, c_pad


# ----------------------------------- full forward -----------------------------------
def gin_forward(x, adj, seg, params, num_features, hidden, num_layers, num_classes):
    n = x.shape[0]
    g = seg.shape[0]
    ops, c_pad = prepare_operands(params, num_features, hidden, num_layers, num_classes)
    # x[:, :num_features] as in the PyTorch forward, then zero-pad features to `hidden`
    x_pad = jnp.zeros((n, hidden), jnp.float32).at[:, :num_features].set(
        x[:, :num_features].astype(jnp.float32))
    args = (ops["scalars"],
            adj.astype(jnp.bfloat16), x_pad,
            ops["w1"], ops["b1"], ops["w2"], ops["b2"],
            ops["lin1_w"], ops["lin1_b"], ops["gate_w"],
            seg.astype(jnp.float32), jnp.transpose(seg).astype(jnp.float32),
            ops["pred_w"], ops["pred_b"])
    in_specs = ([pl.BlockSpec(memory_space=pltpu.MemorySpace.SMEM)]
                + [pl.BlockSpec(memory_space=pltpu.MemorySpace.VMEM)] * (len(args) - 1))
    out = pl.pallas_call(
        _gin_fused_kernel,
        out_shape=jax.ShapeDtypeStruct((g, c_pad), jnp.float32),
        in_specs=in_specs,
        out_specs=pl.BlockSpec(memory_space=pltpu.MemorySpace.VMEM),
        compiler_params=pltpu.CompilerParams(vmem_limit_bytes=32 * 1024 * 1024),
    )(*args)
    return out[:, :num_classes]


# ------------------------------- deterministic params -------------------------------
def _linear_init(key, fan_in, fan_out):
    # PyTorch nn.Linear default: U(-1/sqrt(fan_in), 1/sqrt(fan_in)) for weight and bias
    kw, kb = jax.random.split(key)
    bound = 1.0 / math.sqrt(fan_in)
    w = jax.random.uniform(kw, (fan_in, fan_out), jnp.float32, -bound, bound)
    b = jax.random.uniform(kb, (1, fan_out), jnp.float32, -bound, bound)
    return w, b


def make_params(key, num_features, hidden, num_layers, num_classes):
    convs = []
    for l in range(num_layers):
        key, k1, k2 = jax.random.split(key, 3)
        fin = num_features if l == 0 else hidden
        w1, b1 = _linear_init(k1, fin, hidden)
        w2, b2 = _linear_init(k2, hidden, hidden)
        convs.append(dict(
            eps=jnp.zeros((1, 1), jnp.float32),            # GINConv train_eps init = 0
            w1=w1, b1=b1,
            bn1_g=jnp.ones((1, hidden), jnp.float32), bn1_b=jnp.zeros((1, hidden), jnp.float32),
            bn1_m=jnp.zeros((1, hidden), jnp.float32), bn1_v=jnp.ones((1, hidden), jnp.float32),
            w2=w2, b2=b2,
            bn2_g=jnp.ones((1, hidden), jnp.float32), bn2_b=jnp.zeros((1, hidden), jnp.float32),
            bn2_m=jnp.zeros((1, hidden), jnp.float32), bn2_v=jnp.ones((1, hidden), jnp.float32),
        ))
    key, k1, k2, k3 = jax.random.split(key, 4)
    lin1_w, lin1_b = _linear_init(k1, num_layers * hidden, hidden)
    gate_w, gate_b = _linear_init(k2, hidden, 1)
    pred_w, pred_b = _linear_init(k3, hidden, num_classes)
    head = dict(lin1_w=lin1_w, lin1_b=lin1_b, gate_w=gate_w, gate_b=gate_b,
                pred_w=pred_w, pred_b=pred_b)
    return dict(convs=convs, head=head)


if __name__ == "__main__":
    # CIFAR10-style config: num_features = 5, hidden = 32, 4 layers, 10 classes
    num_features = 5
    hidden = 32
    num_layers = 4
    num_classes = 10

    nodes_per_graph = 12
    num_graphs = 2
    N = nodes_per_graph * num_graphs

    key = jax.random.PRNGKey(0)
    key, kx = jax.random.split(key)

    # node features (extra column to exercise the x[:, :num_features] slice in forward)
    x_raw = jax.random.normal(kx, (N, num_features + 1), jnp.float32)

    # deterministic edge set: bidirectional ring within each graph
    src, dst = [], []
    for g in range(num_graphs):
        off = g * nodes_per_graph
        for i in range(nodes_per_graph):
            j = (i + 1) % nodes_per_graph
            src += [off + i, off + j]
            dst += [off + j, off + i]
    edge_index = jnp.array([src, dst], dtype=jnp.int32)         # (2, E)

    # dense adjacency for "add" aggregation (glue; built once outside the kernel)
    adj = jnp.zeros((N, N), jnp.float32).at[edge_index[1], edge_index[0]].add(1.0)

    # batch vector -> one-hot graph membership matrix (G, N)
    batch = jnp.repeat(jnp.arange(num_graphs, dtype=jnp.int32), nodes_per_graph)
    seg = (batch[None, :] == jnp.arange(num_graphs, dtype=jnp.int32)[:, None]).astype(jnp.float32)

    params = make_params(key, num_features, hidden, num_layers, num_classes)

    out = gin_forward(x_raw, adj, seg, params,
                      num_features, hidden, num_layers, num_classes)   # (G, num_classes)
    jax.block_until_ready(out)
    assert out.shape == (num_graphs, num_classes)
    assert bool(jnp.all(jnp.isfinite(out)))
    print("KERNEL_OK")
</pallas_src>

<mosaic_0001>
module attributes {stable_mosaic.version = 11 : i64} {
  func.func @_gin_fused_kernel(%arg0: memref<5xf32, #tpu.memory_space<smem>>, %arg1: memref<24x24xbf16, #tpu.memory_space<vmem>>, %arg2: memref<24x32xf32, #tpu.memory_space<vmem>>, %arg3: memref<4x32x32xbf16, #tpu.memory_space<vmem>>, %arg4: memref<4x1x32xf32, #tpu.memory_space<vmem>>, %arg5: memref<4x32x32xbf16, #tpu.memory_space<vmem>>, %arg6: memref<4x1x32xf32, #tpu.memory_space<vmem>>, %arg7: memref<4x32x32xbf16, #tpu.memory_space<vmem>>, %arg8: memref<1x32xf32, #tpu.memory_space<vmem>>, %arg9: memref<1x32xf32, #tpu.memory_space<vmem>>, %arg10: memref<2x24xf32, #tpu.memory_space<vmem>>, %arg11: memref<24x2xf32, #tpu.memory_space<vmem>>, %arg12: memref<32x128xf32, #tpu.memory_space<vmem>>, %arg13: memref<1x128xf32, #tpu.memory_space<vmem>>, %arg14: memref<2x128xf32, #tpu.memory_space<vmem>>) attributes {dimension_semantics = [], scalar_prefetch = 0 : i64, scratch_operands = 0 : i64, tpu.core_type = #tpu.core_type<tc>} {
    %c0 = arith.constant 0 : index
    %c0_0 = arith.constant 0 : index
    %0 = vector.load %arg1[%c0, %c0_0] : memref<24x24xbf16, #tpu.memory_space<vmem>>, vector<24x24xbf16>
    %c0_1 = arith.constant 0 : index
    %c0_2 = arith.constant 0 : index
    %1 = vector.load %arg2[%c0_1, %c0_2] : memref<24x32xf32, #tpu.memory_space<vmem>>, vector<24x32xf32>
    %cst = arith.constant 0.000000e+00 : f32
    %2 = vector.broadcast %cst : f32 to vector<24x32xf32>
    %3 = arith.truncf %1 : vector<24x32xf32> to vector<24x32xbf16>
    %cst_3 = arith.constant dense<0.000000e+00> : vector<24x32xf32>
    %4 = tpu.matmul %0, %3, %cst_3 {dimension_numbers = #tpu.dot_dimension_numbers<[1], [0], [0], [1], [0, 0, 1, 1], [], []>} : vector<24x24xbf16>, vector<24x32xbf16>, vector<24x32xf32> -> vector<24x32xf32>
    %c0_4 = arith.constant 0 : index
    %5 = memref.load %arg0[%c0_4] : memref<5xf32, #tpu.memory_space<smem>>
    %cst_5 = arith.constant 1.000000e+00 : f32
    %6 = arith.addf %cst_5, %5 : f32
    %7 = vector.broadcast %6 : f32 to vector<24x32xf32>
    %8 = arith.mulf %7, %1 : vector<24x32xf32>
    %9 = arith.addf %8, %4 : vector<24x32xf32>
    %10 = arith.truncf %9 : vector<24x32xf32> to vector<24x32xbf16>
    %c0_6 = arith.constant 0 : index
    %c0_7 = arith.constant 0 : index
    %c0_8 = arith.constant 0 : index
    %11 = vector.load %arg3[%c0_6, %c0_7, %c0_8] : memref<4x32x32xbf16, #tpu.memory_space<vmem>>, vector<1x32x32xbf16>
    %12 = vector.shape_cast %11 : vector<1x32x32xbf16> to vector<32x32xbf16>
    %cst_9 = arith.constant dense<0.000000e+00> : vector<24x32xf32>
    %13 = tpu.matmul %10, %12, %cst_9 {dimension_numbers = #tpu.dot_dimension_numbers<[1], [0], [0], [1], [0, 0, 1, 1], [], []>} : vector<24x32xbf16>, vector<32x32xbf16>, vector<24x32xf32> -> vector<24x32xf32>
    %c0_10 = arith.constant 0 : index
    %c0_11 = arith.constant 0 : index
    %c0_12 = arith.constant 0 : index
    %14 = vector.load %arg4[%c0_10, %c0_11, %c0_12] : memref<4x1x32xf32, #tpu.memory_space<vmem>>, vector<1x1x32xf32>
    %15 = vector.shape_cast %14 : vector<1x1x32xf32> to vector<1x32xf32>
    %16 = vector.broadcast %15 : vector<1x32xf32> to vector<24x32xf32>
    %17 = arith.addf %13, %16 : vector<24x32xf32>
    %cst_13 = arith.constant 0.000000e+00 : f32
    %18 = vector.broadcast %cst_13 : f32 to vector<24x32xf32>
    %19 = arith.maximumf %17, %18 : vector<24x32xf32>
    %20 = arith.truncf %19 : vector<24x32xf32> to vector<24x32xbf16>
    %c0_14 = arith.constant 0 : index
    %c0_15 = arith.constant 0 : index
    %c0_16 = arith.constant 0 : index
    %21 = vector.load %arg5[%c0_14, %c0_15, %c0_16] : memref<4x32x32xbf16, #tpu.memory_space<vmem>>, vector<1x32x32xbf16>
    %22 = vector.shape_cast %21 : vector<1x32x32xbf16> to vector<32x32xbf16>
    %cst_17 = arith.constant dense<0.000000e+00> : vector<24x32xf32>
    %23 = tpu.matmul %20, %22, %cst_17 {dimension_numbers = #tpu.dot_dimension_numbers<[1], [0], [0], [1], [0, 0, 1, 1], [], []>} : vector<24x32xbf16>, vector<32x32xbf16>, vector<24x32xf32> -> vector<24x32xf32>
    %c0_18 = arith.constant 0 : index
    %c0_19 = arith.constant 0 : index
    %c0_20 = arith.constant 0 : index
    %24 = vector.load %arg6[%c0_18, %c0_19, %c0_20] : memref<4x1x32xf32, #tpu.memory_space<vmem>>, vector<1x1x32xf32>
    %25 = vector.shape_cast %24 : vector<1x1x32xf32> to vector<1x32xf32>
    %26 = vector.broadcast %25 : vector<1x32xf32> to vector<24x32xf32>
    %27 = arith.addf %23, %26 : vector<24x32xf32>
    %cst_21 = arith.constant 0.000000e+00 : f32
    %28 = vector.broadcast %cst_21 : f32 to vector<24x32xf32>
    %29 = arith.maximumf %27, %28 : vector<24x32xf32>
    %30 = arith.truncf %29 : vector<24x32xf32> to vector<24x32xbf16>
    %c0_22 = arith.constant 0 : index
    %c0_23 = arith.constant 0 : index
    %c0_24 = arith.constant 0 : index
    %31 = vector.load %arg7[%c0_22, %c0_23, %c0_24] : memref<4x32x32xbf16, #tpu.memory_space<vmem>>, vector<1x32x32xbf16>
    %32 = vector.shape_cast %31 : vector<1x32x32xbf16> to vector<32x32xbf16>
    %cst_25 = arith.constant dense<0.000000e+00> : vector<24x32xf32>
    %33 = tpu.matmul %30, %32, %cst_25 {dimension_numbers = #tpu.dot_dimension_numbers<[1], [0], [0], [1], [0, 0, 1, 1], [], []>} : vector<24x32xbf16>, vector<32x32xbf16>, vector<24x32xf32> -> vector<24x32xf32>
    %34 = arith.addf %2, %33 : vector<24x32xf32>
    %35 = arith.truncf %29 : vector<24x32xf32> to vector<24x32xbf16>
    %cst_26 = arith.constant dense<0.000000e+00> : vector<24x32xf32>
    %36 = tpu.matmul %0, %35, %cst_26 {dimension_numbers = #tpu.dot_dimension_numbers<[1], [0], [0], [1], [0, 0, 1, 1], [], []>} : vector<24x24xbf16>, vector<24x32xbf16>, vector<24x32xf32> -> vector<24x32xf32>
    %c1 = arith.constant 1 : index
    %37 = memref.load %arg0[%c1] : memref<5xf32, #tpu.memory_space<smem>>
    %cst_27 = arith.constant 1.000000e+00 : f32
    %38 = arith.addf %cst_27, %37 : f32
    %39 = vector.broadcast %38 : f32 to vector<24x32xf32>
    %40 = arith.mulf %39, %29 : vector<24x32xf32>
    %41 = arith.addf %40, %36 : vector<24x32xf32>
    %42 = arith.truncf %41 : vector<24x32xf32> to vector<24x32xbf16>
    %c1_28 = arith.constant 1 : index
    %c0_29 = arith.constant 0 : index
    %c0_30 = arith.constant 0 : index
    %43 = vector.load %arg3[%c1_28, %c0_29, %c0_30] : memref<4x32x32xbf16, #tpu.memory_space<vmem>>, vector<1x32x32xbf16>
    %44 = vector.shape_cast %43 : vector<1x32x32xbf16> to vector<32x32xbf16>
    %cst_31 = arith.constant dense<0.000000e+00> : vector<24x32xf32>
    %45 = tpu.matmul %42, %44, %cst_31 {dimension_numbers = #tpu.dot_dimension_numbers<[1], [0], [0], [1], [0, 0, 1, 1], [], []>} : vector<24x32xbf16>, vector<32x32xbf16>, vector<24x32xf32> -> vector<24x32xf32>
    %c1_32 = arith.constant 1 : index
    %c0_33 = arith.constant 0 : index
    %c0_34 = arith.constant 0 : index
    %46 = vector.load %arg4[%c1_32, %c0_33, %c0_34] : memref<4x1x32xf32, #tpu.memory_space<vmem>>, vector<1x1x32xf32>
    %47 = vector.shape_cast %46 : vector<1x1x32xf32> to vector<1x32xf32>
    %48 = vector.broadcast %47 : vector<1x32xf32> to vector<24x32xf32>
    %49 = arith.addf %45, %48 : vector<24x32xf32>
    %cst_35 = arith.constant 0.000000e+00 : f32
    %50 = vector.broadcast %cst_35 : f32 to vector<24x32xf32>
    %51 = arith.maximumf %49, %50 : vector<24x32xf32>
    %52 = arith.truncf %51 : vector<24x32xf32> to vector<24x32xbf16>
    %c1_36 = arith.constant 1 : index
    %c0_37 = arith.constant 0 : index
    %c0_38 = arith.constant 0 : index
    %53 = vector.load %arg5[%c1_36, %c0_37, %c0_38] : memref<4x32x32xbf16, #tpu.memory_space<vmem>>, vector<1x32x32xbf16>
    %54 = vector.shape_cast %53 : vector<1x32x32xbf16> to vector<32x32xbf16>
    %cst_39 = arith.constant dense<0.000000e+00> : vector<24x32xf32>
    %55 = tpu.matmul %52, %54, %cst_39 {dimension_numbers = #tpu.dot_dimension_numbers<[1], [0], [0], [1], [0, 0, 1, 1], [], []>} : vector<24x32xbf16>, vector<32x32xbf16>, vector<24x32xf32> -> vector<24x32xf32>
    %c1_40 = arith.constant 1 : index
    %c0_41 = arith.constant 0 : index
    %c0_42 = arith.constant 0 : index
    %56 = vector.load %arg6[%c1_40, %c0_41, %c0_42] : memref<4x1x32xf32, #tpu.memory_space<vmem>>, vector<1x1x32xf32>
    %57 = vector.shape_cast %56 : vector<1x1x32xf32> to vector<1x32xf32>
    %58 = vector.broadcast %57 : vector<1x32xf32> to vector<24x32xf32>
    %59 = arith.addf %55, %58 : vector<24x32xf32>
    %cst_43 = arith.constant 0.000000e+00 : f32
    %60 = vector.broadcast %cst_43 : f32 to vector<24x32xf32>
    %61 = arith.maximumf %59, %60 : vector<24x32xf32>
    %62 = arith.truncf %61 : vector<24x32xf32> to vector<24x32xbf16>
    %c1_44 = arith.constant 1 : index
    %c0_45 = arith.constant 0 : index
    %c0_46 = arith.constant 0 : index
    %63 = vector.load %arg7[%c1_44, %c0_45, %c0_46] : memref<4x32x32xbf16, #tpu.memory_space<vmem>>, vector<1x32x32xbf16>
    %64 = vector.shape_cast %63 : vector<1x32x32xbf16> to vector<32x32xbf16>
    %cst_47 = arith.constant dense<0.000000e+00> : vector<24x32xf32>
    %65 = tpu.matmul %62, %64, %cst_47 {dimension_numbers = #tpu.dot_dimension_numbers<[1], [0], [0], [1], [0, 0, 1, 1], [], []>} : vector<24x32xbf16>, vector<32x32xbf16>, vector<24x32xf32> -> vector<24x32xf32>
    %66 = arith.addf %34, %65 : vector<24x32xf32>
    %67 = arith.truncf %61 : vector<24x32xf32> to vector<24x32xbf16>
    %cst_48 = arith.constant dense<0.000000e+00> : vector<24x32xf32>
    %68 = tpu.matmul %0, %67, %cst_48 {dimension_numbers = #tpu.dot_dimension_numbers<[1], [0], [0], [1], [0, 0, 1, 1], [], []>} : vector<24x24xbf16>, vector<24x32xbf16>, vector<24x32xf32> -> vector<24x32xf32>
    %c2 = arith.constant 2 : index
    %69 = memref.load %arg0[%c2] : memref<5xf32, #tpu.memory_space<smem>>
    %cst_49 = arith.constant 1.000000e+00 : f32
    %70 = arith.addf %cst_49, %69 : f32
    %71 = vector.broadcast %70 : f32 to vector<24x32xf32>
    %72 = arith.mulf %71, %61 : vector<24x32xf32>
    %73 = arith.addf %72, %68 : vector<24x32xf32>
    %74 = arith.truncf %73 : vector<24x32xf32> to vector<24x32xbf16>
    %c2_50 = arith.constant 2 : index
    %c0_51 = arith.constant 0 : index
    %c0_52 = arith.constant 0 : index
    %75 = vector.load %arg3[%c2_50, %c0_51, %c0_52] : memref<4x32x32xbf16, #tpu.memory_space<vmem>>, vector<1x32x32xbf16>
    %76 = vector.shape_cast %75 : vector<1x32x32xbf16> to vector<32x32xbf16>
    %cst_53 = arith.constant dense<0.000000e+00> : vector<24x32xf32>
    %77 = tpu.matmul %74, %76, %cst_53 {dimension_numbers = #tpu.dot_dimension_numbers<[1], [0], [0], [1], [0, 0, 1, 1], [], []>} : vector<24x32xbf16>, vector<32x32xbf16>, vector<24x32xf32> -> vector<24x32xf32>
    %c2_54 = arith.constant 2 : index
    %c0_55 = arith.constant 0 : index
    %c0_56 = arith.constant 0 : index
    %78 = vector.load %arg4[%c2_54, %c0_55, %c0_56] : memref<4x1x32xf32, #tpu.memory_space<vmem>>, vector<1x1x32xf32>
    %79 = vector.shape_cast %78 : vector<1x1x32xf32> to vector<1x32xf32>
    %80 = vector.broadcast %79 : vector<1x32xf32> to vector<24x32xf32>
    %81 = arith.addf %77, %80 : vector<24x32xf32>
    %cst_57 = arith.constant 0.000000e+00 : f32
    %82 = vector.broadcast %cst_57 : f32 to vector<24x32xf32>
    %83 = arith.maximumf %81, %82 : vector<24x32xf32>
    %84 = arith.truncf %83 : vector<24x32xf32> to vector<24x32xbf16>
    %c2_58 = arith.constant 2 : index
    %c0_59 = arith.constant 0 : index
    %c0_60 = arith.constant 0 : index
    %85 = vector.load %arg5[%c2_58, %c0_59, %c0_60] : memref<4x32x32xbf16, #tpu.memory_space<vmem>>, vector<1x32x32xbf16>
    %86 = vector.shape_cast %85 : vector<1x32x32xbf16> to vector<32x32xbf16>
    %cst_61 = arith.constant dense<0.000000e+00> : vector<24x32xf32>
    %87 = tpu.matmul %84, %86, %cst_61 {dimension_numbers = #tpu.dot_dimension_numbers<[1], [0], [0], [1], [0, 0, 1, 1], [], []>} : vector<24x32xbf16>, vector<32x32xbf16>, vector<24x32xf32> -> vector<24x32xf32>
    %c2_62 = arith.constant 2 : index
    %c0_63 = arith.constant 0 : index
    %c0_64 = arith.constant 0 : index
    %88 = vector.load %arg6[%c2_62, %c0_63, %c0_64] : memref<4x1x32xf32, #tpu.memory_space<vmem>>, vector<1x1x32xf32>
    %89 = vector.shape_cast %88 : vector<1x1x32xf32> to vector<1x32xf32>
    %90 = vector.broadcast %89 : vector<1x32xf32> to vector<24x32xf32>
    %91 = arith.addf %87, %90 : vector<24x32xf32>
    %cst_65 = arith.constant 0.000000e+00 : f32
    %92 = vector.broadcast %cst_65 : f32 to vector<24x32xf32>
    %93 = arith.maximumf %91, %92 : vector<24x32xf32>
    %94 = arith.truncf %93 : vector<24x32xf32> to vector<24x32xbf16>
    %c2_66 = arith.constant 2 : index
    %c0_67 = arith.constant 0 : index
    %c0_68 = arith.constant 0 : index
    %95 = vector.load %arg7[%c2_66, %c0_67, %c0_68] : memref<4x32x32xbf16, #tpu.memory_space<vmem>>, vector<1x32x32xbf16>
    %96 = vector.shape_cast %95 : vector<1x32x32xbf16> to vector<32x32xbf16>
    %cst_69 = arith.constant dense<0.000000e+00> : vector<24x32xf32>
    %97 = tpu.matmul %94, %96, %cst_69 {dimension_numbers = #tpu.dot_dimension_numbers<[1], [0], [0], [1], [0, 0, 1, 1], [], []>} : vector<24x32xbf16>, vector<32x32xbf16>, vector<24x32xf32> -> vector<24x32xf32>
    %98 = arith.addf %66, %97 : vector<24x32xf32>
    %99 = arith.truncf %93 : vector<24x32xf32> to vector<24x32xbf16>
    %cst_70 = arith.constant dense<0.000000e+00> : vector<24x32xf32>
    %100 = tpu.matmul %0, %99, %cst_70 {dimension_numbers = #tpu.dot_dimension_numbers<[1], [0], [0], [1], [0, 0, 1, 1], [], []>} : vector<24x24xbf16>, vector<24x32xbf16>, vector<24x32xf32> -> vector<24x32xf32>
    %c3 = arith.constant 3 : index
    %101 = memref.load %arg0[%c3] : memref<5xf32, #tpu.memory_space<smem>>
    %cst_71 = arith.constant 1.000000e+00 : f32
    %102 = arith.addf %cst_71, %101 : f32
    %103 = vector.broadcast %102 : f32 to vector<24x32xf32>
    %104 = arith.mulf %103, %93 : vector<24x32xf32>
    %105 = arith.addf %104, %100 : vector<24x32xf32>
    %106 = arith.truncf %105 : vector<24x32xf32> to vector<24x32xbf16>
    %c3_72 = arith.constant 3 : index
    %c0_73 = arith.constant 0 : index
    %c0_74 = arith.constant 0 : index
    %107 = vector.load %arg3[%c3_72, %c0_73, %c0_74] : memref<4x32x32xbf16, #tpu.memory_space<vmem>>, vector<1x32x32xbf16>
    %108 = vector.shape_cast %107 : vector<1x32x32xbf16> to vector<32x32xbf16>
    %cst_75 = arith.constant dense<0.000000e+00> : vector<24x32xf32>
    %109 = tpu.matmul %106, %108, %cst_75 {dimension_numbers = #tpu.dot_dimension_numbers<[1], [0], [0], [1], [0, 0, 1, 1], [], []>} : vector<24x32xbf16>, vector<32x32xbf16>, vector<24x32xf32> -> vector<24x32xf32>
    %c3_76 = arith.constant 3 : index
    %c0_77 = arith.constant 0 : index
    %c0_78 = arith.constant 0 : index
    %110 = vector.load %arg4[%c3_76, %c0_77, %c0_78] : memref<4x1x32xf32, #tpu.memory_space<vmem>>, vector<1x1x32xf32>
    %111 = vector.shape_cast %110 : vector<1x1x32xf32> to vector<1x32xf32>
    %112 = vector.broadcast %111 : vector<1x32xf32> to vector<24x32xf32>
    %113 = arith.addf %109, %112 : vector<24x32xf32>
    %cst_79 = arith.constant 0.000000e+00 : f32
    %114 = vector.broadcast %cst_79 : f32 to vector<24x32xf32>
    %115 = arith.maximumf %113, %114 : vector<24x32xf32>
    %116 = arith.truncf %115 : vector<24x32xf32> to vector<24x32xbf16>
    %c3_80 = arith.constant 3 : index
    %c0_81 = arith.constant 0 : index
    %c0_82 = arith.constant 0 : index
    %117 = vector.load %arg5[%c3_80, %c0_81, %c0_82] : memref<4x32x32xbf16, #tpu.memory_space<vmem>>, vector<1x32x32xbf16>
    %118 = vector.shape_cast %117 : vector<1x32x32xbf16> to vector<32x32xbf16>
    %cst_83 = arith.constant dense<0.000000e+00> : vector<24x32xf32>
    %119 = tpu.matmul %116, %118, %cst_83 {dimension_numbers = #tpu.dot_dimension_numbers<[1], [0], [0], [1], [0, 0, 1, 1], [], []>} : vector<24x32xbf16>, vector<32x32xbf16>, vector<24x32xf32> -> vector<24x32xf32>
    %c3_84 = arith.constant 3 : index
    %c0_85 = arith.constant 0 : index
    %c0_86 = arith.constant 0 : index
    %120 = vector.load %arg6[%c3_84, %c0_85, %c0_86] : memref<4x1x32xf32, #tpu.memory_space<vmem>>, vector<1x1x32xf32>
    %121 = vector.shape_cast %120 : vector<1x1x32xf32> to vector<1x32xf32>
    %122 = vector.broadcast %121 : vector<1x32xf32> to vector<24x32xf32>
    %123 = arith.addf %119, %122 : vector<24x32xf32>
    %cst_87 = arith.constant 0.000000e+00 : f32
    %124 = vector.broadcast %cst_87 : f32 to vector<24x32xf32>
    %125 = arith.maximumf %123, %124 : vector<24x32xf32>
    %126 = arith.truncf %125 : vector<24x32xf32> to vector<24x32xbf16>
    %c3_88 = arith.constant 3 : index
    %c0_89 = arith.constant 0 : index
    %c0_90 = arith.constant 0 : index
    %127 = vector.load %arg7[%c3_88, %c0_89, %c0_90] : memref<4x32x32xbf16, #tpu.memory_space<vmem>>, vector<1x32x32xbf16>
    %128 = vector.shape_cast %127 : vector<1x32x32xbf16> to vector<32x32xbf16>
    %cst_91 = arith.constant dense<0.000000e+00> : vector<24x32xf32>
    %129 = tpu.matmul %126, %128, %cst_91 {dimension_numbers = #tpu.dot_dimension_numbers<[1], [0], [0], [1], [0, 0, 1, 1], [], []>} : vector<24x32xbf16>, vector<32x32xbf16>, vector<24x32xf32> -> vector<24x32xf32>
    %130 = arith.addf %98, %129 : vector<24x32xf32>
    %c0_92 = arith.constant 0 : index
    %c0_93 = arith.constant 0 : index
    %131 = vector.load %arg8[%c0_92, %c0_93] : memref<1x32xf32, #tpu.memory_space<vmem>>, vector<1x32xf32>
    %132 = vector.broadcast %131 : vector<1x32xf32> to vector<24x32xf32>
    %133 = arith.addf %130, %132 : vector<24x32xf32>
    %cst_94 = arith.constant 0.000000e+00 : f32
    %134 = vector.broadcast %cst_94 : f32 to vector<24x32xf32>
    %135 = arith.maximumf %133, %134 : vector<24x32xf32>
    %c0_95 = arith.constant 0 : index
    %c0_96 = arith.constant 0 : index
    %136 = vector.load %arg9[%c0_95, %c0_96] : memref<1x32xf32, #tpu.memory_space<vmem>>, vector<1x32xf32>
    %137 = vector.broadcast %136 : vector<1x32xf32> to vector<24x32xf32>
    %138 = arith.mulf %135, %137 : vector<24x32xf32>
    %cst_97 = arith.constant dense<0.000000e+00> : vector<24xf32>
    %139 = vector.multi_reduction <add>, %138, %cst_97 [1] : vector<24x32xf32> to vector<24xf32>
    %140 = vector.shape_cast %139 : vector<24xf32> to vector<24x1xf32>
    %c4 = arith.constant 4 : index
    %141 = memref.load %arg0[%c4] : memref<5xf32, #tpu.memory_space<smem>>
    %142 = vector.broadcast %141 : f32 to vector<24x1xf32>
    %143 = arith.addf %140, %142 : vector<24x1xf32>
    %cst_98 = arith.constant dense<0xFF800000> : vector<1xf32>
    %144 = vector.multi_reduction <maximumf>, %143, %cst_98 [0] : vector<24x1xf32> to vector<1xf32>
    %145 = vector.shape_cast %144 : vector<1xf32> to vector<1x1xf32>
    %146 = vector.broadcast %145 : vector<1x1xf32> to vector<24x1xf32>
    %147 = arith.subf %143, %146 : vector<24x1xf32>
    %148 = math.exp %147 : vector<24x1xf32>
    %c0_99 = arith.constant 0 : index
    %c0_100 = arith.constant 0 : index
    %149 = vector.load %arg10[%c0_99, %c0_100] : memref<2x24xf32, #tpu.memory_space<vmem>>, vector<2x24xf32>
    %cst_101 = arith.constant dense<0.000000e+00> : vector<2x1xf32>
    %150 = tpu.matmul %149, %148, %cst_101 {dimension_numbers = #tpu.dot_dimension_numbers<[1], [0], [0], [1], [0, 0, 1, 1], [], []>} : vector<2x24xf32>, vector<24x1xf32>, vector<2x1xf32> -> vector<2x1xf32>
    %c0_102 = arith.constant 0 : index
    %c0_103 = arith.constant 0 : index
    %151 = vector.load %arg11[%c0_102, %c0_103] : memref<24x2xf32, #tpu.memory_space<vmem>>, vector<24x2xf32>
    %cst_104 = arith.constant dense<0.000000e+00> : vector<24x1xf32>
    %152 = tpu.matmul %151, %150, %cst_104 {dimension_numbers = #tpu.dot_dimension_numbers<[1], [0], [0], [1], [0, 0, 1, 1], [], []>} : vector<24x2xf32>, vector<2x1xf32>, vector<24x1xf32> -> vector<24x1xf32>
    %153 = arith.divf %148, %152 : vector<24x1xf32>
    %c0_105 = arith.constant 0 : index
    %c0_106 = arith.constant 0 : index
    %154 = vector.load %arg10[%c0_105, %c0_106] : memref<2x24xf32, #tpu.memory_space<vmem>>, vector<2x24xf32>
    %155 = vector.broadcast %153 : vector<24x1xf32> to vector<24x32xf32>
    %156 = arith.mulf %155, %135 : vector<24x32xf32>
    %cst_107 = arith.constant dense<0.000000e+00> : vector<2x32xf32>
    %157 = tpu.matmul %154, %156, %cst_107 {dimension_numbers = #tpu.dot_dimension_numbers<[1], [0], [0], [1], [0, 0, 1, 1], [], []>} : vector<2x24xf32>, vector<24x32xf32>, vector<2x32xf32> -> vector<2x32xf32>
    %c0_108 = arith.constant 0 : index
    %c0_109 = arith.constant 0 : index
    %158 = vector.load %arg12[%c0_108, %c0_109] : memref<32x128xf32, #tpu.memory_space<vmem>>, vector<32x128xf32>
    %cst_110 = arith.constant dense<0.000000e+00> : vector<2x128xf32>
    %159 = tpu.matmul %157, %158, %cst_110 {dimension_numbers = #tpu.dot_dimension_numbers<[1], [0], [0], [1], [0, 0, 1, 1], [], []>} : vector<2x32xf32>, vector<32x128xf32>, vector<2x128xf32> -> vector<2x128xf32>
    %c0_111 = arith.constant 0 : index
    %c0_112 = arith.constant 0 : index
    %160 = vector.load %arg13[%c0_111, %c0_112] : memref<1x128xf32, #tpu.memory_space<vmem>>, vector<1x128xf32>
    %161 = vector.broadcast %160 : vector<1x128xf32> to vector<2x128xf32>
    %162 = arith.addf %159, %161 : vector<2x128xf32>
    %c0_113 = arith.constant 0 : index
    %c0_114 = arith.constant 0 : index
    %163 = vector.load %arg14[%c0_113, %c0_114] : memref<2x128xf32, #tpu.memory_space<vmem>>, vector<2x128xf32>
    tpu.vector_store %arg14[%c0_113, %c0_114], %162 {strides = array<i32>} : memref<2x128xf32, #tpu.memory_space<vmem>>, vector<2x128xf32>,
    return
  }
}

</mosaic_0001>

<llo_original>
// kernel: tpu_custom_call.1
$region0: #{tpu_custom_call.1}
  #allocation0 [shape = 'u32[]', space=smem, size = 0x4, offset = 0x4, fixed_abs, tag = 'smem constant byte address 0x4 - core index']
  #allocation1 [shape = 'u32[72,128]{1,0:T(1,128)}', space=vmem, size = 0x9000, scoped, tag = 'internal scratch']
  %s0 = inlined_call_operand.vmem [shape: f32[5], index: 0, kind: input, shape index: {}]
  %s1 = inlined_call_operand.hbm [shape: bf16[24,24], index: 1, kind: input, shape index: {}]
  %s2 = inlined_call_operand.vmem [shape: f32[24,32], index: 2, kind: input, shape index: {}]
  %s3 = inlined_call_operand.hbm [shape: bf16[4,32,32], index: 3, kind: input, shape index: {}]
  %s4 = inlined_call_operand.hbm [shape: f32[4,1,32], index: 4, kind: input, shape index: {}]
  %s5 = inlined_call_operand.hbm [shape: bf16[4,32,32], index: 5, kind: input, shape index: {}]
  %s6 = inlined_call_operand.hbm [shape: f32[4,1,32], index: 6, kind: input, shape index: {}]
  %s7 = inlined_call_operand.hbm [shape: bf16[4,32,32], index: 7, kind: input, shape index: {}]
  %s8 = inlined_call_operand.vmem [shape: f32[1,32], index: 8, kind: input, shape index: {}]
  %s9 = inlined_call_operand.vmem [shape: f32[1,32], index: 9, kind: input, shape index: {}]
  %s10 = inlined_call_operand.vmem [shape: f32[2,24], index: 10, kind: input, shape index: {}]
  %s11 = inlined_call_operand.vmem [shape: f32[24,2], index: 11, kind: input, shape index: {}]
  %s12 = inlined_call_operand.hbm [shape: f32[32,128], index: 12, kind: input, shape index: {}]
  %s13 = inlined_call_operand.vmem [shape: f32[1,128], index: 13, kind: input, shape index: {}]
  %s14 = inlined_call_operand.hbm [shape: f32[2,128], index: 14, kind: output, shape index: {}]
  %s15 = sld [smem:[#allocation0]]
  $region98: #{tpu_custom_call.1} parent=0
    _
  %s17 = ssub.s32 1, %s15
  %s18 = scalar_select 0, %s17, %s15
  $region1: #{tpu_custom_call.1} parent=0
    #allocation2 [shape = 'u8[512]{0}', space=smem, size = 0x200, scoped, tag = 'input window, operand 0, single buffered']
    #allocation3 [shape = 's32[1]{0}', space=sflag, size = 0x4, scoped, tag = 'scoped memory for tpu_custom_call.1']
    #allocation4 [shape = 's32[1]{0}', space=sflag, size = 0x4, scoped, tag = 'scoped memory for tpu_custom_call.1']
    #allocation5 [shape = 's32[1]{0}', space=sflag, size = 0x4, scoped, tag = 'scoped memory for tpu_custom_call.1']
    #allocation6 [shape = 'u8[6144]{0}', space=vmem, size = 0x1800, scoped, tag = 'input window, operand 1, single buffered']
    #allocation7 [shape = 'u8[32768]{0}', space=vmem, size = 0x8000, scoped, tag = 'input window, operand 3, single buffered']
    #allocation8 [shape = 's32[1]{0}', space=sflag, size = 0x4, scoped, tag = 'scoped memory for tpu_custom_call.1']
    #allocation9 [shape = 'u8[2048]{0}', space=vmem, size = 0x800, scoped, tag = 'input window, operand 4, single buffered']
    #allocation10 [shape = 'u8[32768]{0}', space=vmem, size = 0x8000, scoped, tag = 'input window, operand 5, single buffered']
    #allocation11 [shape = 's32[1]{0}', space=sflag, size = 0x4, scoped, tag = 'scoped memory for tpu_custom_call.1']
    #allocation12 [shape = 'u8[2048]{0}', space=vmem, size = 0x800, scoped, tag = 'input window, operand 6, single buffered']
    #allocation13 [shape = 'u8[32768]{0}', space=vmem, size = 0x8000, scoped, tag = 'input window, operand 7, single buffered']
    #allocation14 [shape = 's32[1]{0}', space=sflag, size = 0x4, scoped, tag = 'scoped memory for tpu_custom_call.1']
    #allocation15 [shape = 'u8[16384]{0}', space=vmem, size = 0x4000, scoped, tag = 'input window, operand 12, single buffered']
    #allocation16 [shape = 'u8[1024]{0}', space=vmem, size = 0x400, scoped, tag = 'output window, operand 0, single buffered']
    %19 = vsyncpa [#allocation5], 0
    %20 = vsyncpa [#allocation3], 0
    %21 = vsyncpa [#allocation8], 0
    %22 = vsyncpa [#allocation11], 0
    %23 = vsyncpa [#allocation14], 0
    %24 = vsyncpa [#allocation4], 0
    // Predicated region
    $region2: #{tpu_custom_call.1} parent=1 // pred_check
      _
    $region3: #{tpu_custom_call.1} parent=1 // pred_check_branch
      %26 = sbr.rel (0) target = $region5
    $region4: #{tpu_custom_call.1} parent=1 // pred_region
      %28 = vsyncadd [#allocation5], 0
      %s30 = sshll.u32 %s0, 4
      %s31 = int_to_ptr.vmem [resolvable:$true] %s30
      %33 = dma.vmem_to_smem %s31, 16, [#allocation2], [#allocation5]
    $region5: #{tpu_custom_call.1} parent=1 // pred_fallthru
      _
    // Predicated region
    $region6: #{tpu_custom_call.1} parent=1 // pred_check
      _
    $region7: #{tpu_custom_call.1} parent=1 // pred_check_branch
      %35 = sbr.rel (0) target = $region9
    $region8: #{tpu_custom_call.1} parent=1 // pred_region
      %37 = vsyncadd [#allocation3], 0
      %s38 = sshll.u32 %s1, 4
      %s39 = int_to_ptr.hbm [resolvable:$true] %s38
      %s40 = sshll.u32 [#allocation6], 4
      %s41 = int_to_ptr.vmem [resolvable:$true] %s40
      %46 = dma.hbm_to_vmem [thread:$0]  %s39, 192, %s41, [#allocation3], 64, 64, 4
    $region9: #{tpu_custom_call.1} parent=1 // pred_fallthru
      _
    // Predicated region
    $region10: #{tpu_custom_call.1} parent=1 // pred_check
      _
    $region11: #{tpu_custom_call.1} parent=1 // pred_check_branch
      %48 = sbr.rel (0) target = $region13
    $region12: #{tpu_custom_call.1} parent=1 // pred_region
      _
    $region13: #{tpu_custom_call.1} parent=1 // pred_fallthru
      _
    // Predicated region
    $region14: #{tpu_custom_call.1} parent=1 // pred_check
      _
    $region15: #{tpu_custom_call.1} parent=1 // pred_check_branch
      %50 = sbr.rel (0) target = $region17
    $region16: #{tpu_custom_call.1} parent=1 // pred_region
      %52 = vsyncadd [#allocation8], 0
      %s53 = sshll.u32 %s3, 4
      %s54 = int_to_ptr.hbm [resolvable:$true] %s53
      %s55 = sshll.u32 [#allocation7], 4
      %s56 = int_to_ptr.vmem [resolvable:$true] %s55
      %61 = dma.hbm_to_vmem [thread:$0]  %s54, 1024, %s56, [#allocation8], 64, 64, 4
    $region17: #{tpu_custom_call.1} parent=1 // pred_fallthru
      _
    // Predicated region
    $region18: #{tpu_custom_call.1} parent=1 // pred_check
      _
    $region19: #{tpu_custom_call.1} parent=1 // pred_check_branch
      %63 = sbr.rel (0) target = $region21
    $region20: #{tpu_custom_call.1} parent=1 // pred_region
      %65 = vsyncadd [#allocation8], 0
      %s66 = sshll.u32 %s4, 4
      %s67 = int_to_ptr.hbm [resolvable:$true] %s66
      %s68 = sshll.u32 [#allocation9], 4
      %s69 = int_to_ptr.vmem [resolvable:$true] %s68
      %74 = dma.hbm_to_vmem [thread:$0]  %s67, 64, %s69, [#allocation8], 16, 16, 1
    $region21: #{tpu_custom_call.1} parent=1 // pred_fallthru
      _
    // Predicated region
    $region22: #{tpu_custom_call.1} parent=1 // pred_check
      _
    $region23: #{tpu_custom_call.1} parent=1 // pred_check_branch
      %76 = sbr.rel (0) target = $region25
    $region24: #{tpu_custom_call.1} parent=1 // pred_region
      %78 = vsyncadd [#allocation11], 0
      %s79 = sshll.u32 %s5, 4
      %s80 = int_to_ptr.hbm [resolvable:$true] %s79
      %s81 = sshll.u32 [#allocation10], 4
      %s82 = int_to_ptr.vmem [resolvable:$true] %s81
      %87 = dma.hbm_to_vmem [thread:$0]  %s80, 1024, %s82, [#allocation11], 64, 64, 4
    $region25: #{tpu_custom_call.1} parent=1 // pred_fallthru
      _
    // Predicated region
    $region26: #{tpu_custom_call.1} parent=1 // pred_check
      _
    $region27: #{tpu_custom_call.1} parent=1 // pred_check_branch
      %89 = sbr.rel (0) target = $region29
    $region28: #{tpu_custom_call.1} parent=1 // pred_region
      %91 = vsyncadd [#allocation11], 0
      %s92 = sshll.u32 %s6, 4
      %s93 = int_to_ptr.hbm [resolvable:$true] %s92
      %s94 = sshll.u32 [#allocation12], 4
      %s95 = int_to_ptr.vmem [resolvable:$true] %s94
      %100 = dma.hbm_to_vmem [thread:$0]  %s93, 64, %s95, [#allocation11], 16, 16, 1
    $region29: #{tpu_custom_call.1} parent=1 // pred_fallthru
      _
    // Predicated region
    $region30: #{tpu_custom_call.1} parent=1 // pred_check
      _
    $region31: #{tpu_custom_call.1} parent=1 // pred_check_branch
      %102 = sbr.rel (0) target = $region33
    $region32: #{tpu_custom_call.1} parent=1 // pred_region
      %104 = vsyncadd [#allocation14], 0
      %s105 = sshll.u32 %s7, 4
      %s106 = int_to_ptr.hbm [resolvable:$true] %s105
      %s107 = sshll.u32 [#allocation13], 4
      %s108 = int_to_ptr.vmem [resolvable:$true] %s107
      %113 = dma.hbm_to_vmem [thread:$0]  %s106, 1024, %s108, [#allocation14], 64, 64, 4
    $region33: #{tpu_custom_call.1} parent=1 // pred_fallthru
      _
    // Predicated region
    $region34: #{tpu_custom_call.1} parent=1 // pred_check
      _
    $region35: #{tpu_custom_call.1} parent=1 // pred_check_branch
      %115 = sbr.rel (0) target = $region37
    $region36: #{tpu_custom_call.1} parent=1 // pred_region
      _
    $region37: #{tpu_custom_call.1} parent=1 // pred_fallthru
      _
    // Predicated region
    $region38: #{tpu_custom_call.1} parent=1 // pred_check
      _
    $region39: #{tpu_custom_call.1} parent=1 // pred_check_branch
      %117 = sbr.rel (0) target = $region41
    $region40: #{tpu_custom_call.1} parent=1 // pred_region
      _
    $region41: #{tpu_custom_call.1} parent=1 // pred_fallthru
      _
    // Predicated region
    $region42: #{tpu_custom_call.1} parent=1 // pred_check
      _
    $region43: #{tpu_custom_call.1} parent=1 // pred_check_branch
      %119 = sbr.rel (0) target = $region45
    $region44: #{tpu_custom_call.1} parent=1 // pred_region
      _
    $region45: #{tpu_custom_call.1} parent=1 // pred_fallthru
      _
    // Predicated region
    $region46: #{tpu_custom_call.1} parent=1 // pred_check
      _
    $region47: #{tpu_custom_call.1} parent=1 // pred_check_branch
      %121 = sbr.rel (0) target = $region49
    $region48: #{tpu_custom_call.1} parent=1 // pred_region
      _
    $region49: #{tpu_custom_call.1} parent=1 // pred_fallthru
      _
    // Predicated region
    $region50: #{tpu_custom_call.1} parent=1 // pred_check
      _
    $region51: #{tpu_custom_call.1} parent=1 // pred_check_branch
      %123 = sbr.rel (0) target = $region53
    $region52: #{tpu_custom_call.1} parent=1 // pred_region
      %125 = vsyncadd [#allocation14], 0
      %s126 = sshll.u32 %s12, 4
      %s127 = int_to_ptr.hbm [resolvable:$true] %s126
      %s128 = sshll.u32 [#allocation15], 4
      %s129 = int_to_ptr.vmem [resolvable:$true] %s128
      %134 = dma.hbm_to_vmem [thread:$0]  %s127, 512, %s129, [#allocation14], 128, 128, 8
    $region53: #{tpu_custom_call.1} parent=1 // pred_fallthru
      _
    // Predicated region
    $region54: #{tpu_custom_call.1} parent=1 // pred_check
      _
    $region55: #{tpu_custom_call.1} parent=1 // pred_check_branch
      %136 = sbr.rel (0) target = $region57
    $region56: #{tpu_custom_call.1} parent=1 // pred_region
      _
    $region57: #{tpu_custom_call.1} parent=1 // pred_fallthru
      _
    // Predicated region
    $region58: #{tpu_custom_call.1} parent=1 // pred_check
      _
    $region59: #{tpu_custom_call.1} parent=1 // pred_check_branch
      %138 = sbr.rel (0) target = $region61
    $region60: #{tpu_custom_call.1} parent=1 // pred_region
      %140 = dma.done [#allocation5], 16
    $region61: #{tpu_custom_call.1} parent=1 // pred_fallthru
      _
    // Predicated region
    $region62: #{tpu_custom_call.1} parent=1 // pred_check
      _
    $region63: #{tpu_custom_call.1} parent=1 // pred_check_branch
      %142 = sbr.rel (0) target = $region65
    $region64: #{tpu_custom_call.1} parent=1 // pred_region
      %144 = dma.done [#allocation3], 192
    $region65: #{tpu_custom_call.1} parent=1 // pred_fallthru
      _
    // Predicated region
    $region66: #{tpu_custom_call.1} parent=1 // pred_check
      _
    $region67: #{tpu_custom_call.1} parent=1 // pred_check_branch
      %146 = sbr.rel (0) target = $region69
    $region68: #{tpu_custom_call.1} parent=1 // pred_region
      %148 = dma.done [#allocation8], 1024
    $region69: #{tpu_custom_call.1} parent=1 // pred_fallthru
      _
    // Predicated region
    $region70: #{tpu_custom_call.1} parent=1 // pred_check
      _
    $region71: #{tpu_custom_call.1} parent=1 // pred_check_branch
      %150 = sbr.rel (0) target = $region73
    $region72: #{tpu_custom_call.1} parent=1 // pred_region
      %152 = dma.done [#allocation8], 64
    $region73: #{tpu_custom_call.1} parent=1 // pred_fallthru
      _
    // Predicated region
    $region74: #{tpu_custom_call.1} parent=1 // pred_check
      _
    $region75: #{tpu_custom_call.1} parent=1 // pred_check_branch
      %154 = sbr.rel (0) target = $region77
    $region76: #{tpu_custom_call.1} parent=1 // pred_region
      %156 = dma.done [#allocation11], 1024
    $region77: #{tpu_custom_call.1} parent=1 // pred_fallthru
      _
    // Predicated region
    $region78: #{tpu_custom_call.1} parent=1 // pred_check
      _
    $region79: #{tpu_custom_call.1} parent=1 // pred_check_branch
      %158 = sbr.rel (0) target = $region81
    $region80: #{tpu_custom_call.1} parent=1 // pred_region
      %160 = dma.done [#allocation11], 64
    $region81: #{tpu_custom_call.1} parent=1 // pred_fallthru
      _
    // Predicated region
    $region82: #{tpu_custom_call.1} parent=1 // pred_check
      _
    $region83: #{tpu_custom_call.1} parent=1 // pred_check_branch
      %162 = sbr.rel (0) target = $region85
    $region84: #{tpu_custom_call.1} parent=1 // pred_region
      %164 = dma.done [#allocation14], 1024
    $region85: #{tpu_custom_call.1} parent=1 // pred_fallthru
      _
    // Predicated region
    $region86: #{tpu_custom_call.1} parent=1 // pred_check
      _
    $region87: #{tpu_custom_call.1} parent=1 // pred_check_branch
      %166 = sbr.rel (0) target = $region89
    $region88: #{tpu_custom_call.1} parent=1 // pred_region
      %168 = dma.done [#allocation14], 512
    $region89: #{tpu_custom_call.1} parent=1 // pred_fallthru
      _
    %169 = sfence
    %v171 = vld [vmem:[#allocation6] sm:$0xf]
    %v172 = vld [vmem:[#allocation6 + $0x4] sm:$0xf]
    %v173 = vld [vmem:[#allocation6 + $0x8] sm:$0xf]
    %v174 = vld [vmem:[%s2] sm:$0xff]
    %v175 = vld [vmem:[%s2 + $0x8] sm:$0xff]
    %v176 = vld [vmem:[%s2 + $0x10] sm:$0xff]
    %v177 = vpack.c.bf16 %v175, %v174
    %v178 = vpack.c.bf16 %v176, %v176
    %v182 = vunpack.c.l.b16 %v171
    %v183 = vunpack.c.l.b16 %v172
    %v184 = vunpack.c.l.b16 %v173
    %v185 = vpack.c.b16 %v183, %v182
    %v186 = vpack.c.b16 %v184, %v184
    %vm187 = vcmask 195584
    %v189 = vsel %vm187, %v185, 0
    %v192 = vsel %vm187, %v186, 0
    %vm194 = vcmask 1043456
    %v196 = vsel %vm194, %v178, 0
    %198 = vmatpush.bf16.msra.mxu0 0
    %199 = vmatpush.bf16.msra.mxu0 0
    %200 = vmatpush.bf16.msra.mxu0 0
    %201 = vmatpush.bf16.msra.mxu0 0
    %202 = vmatpush.bf16.msra.mxu0 0
    %203 = vmatpush.bf16.msra.mxu0 0
    %204 = vmatpush.bf16.msra.mxu0 %v196
    %205 = vmatpush.bf16.msra.mxu0 %v177
    %206 = vmatmul.bf16.gmra.mxu0 %v189
    %v207 = vpop.f32.mrf.mxu0
    %v208 = vadd.f32 0.0, %v207
    %v209 = vpop.f32.mrf.mxu0
    %v210 = vadd.f32 0.0, %v209
    %211 = vmatmul.bf16.gmra.mxu0 %v192
    %v212 = vpop.f32.mrf.mxu0
    %v213 = vadd.f32 0.0, %v212
    %v214 = vpop.f32.mrf.mxu0
    %215 = vdwg.mxu0
    %s216 = sld [smem:[#allocation2]]
    %s217 = sadd.f32 %s216, 1.0
    %v218 = vstv %s217
    %v219 = vmul.f32 %v218, %v174
    %v220 = vmul.f32 %v218, %v175
    %v221 = vmul.f32 %v218, %v176
    %v222 = vadd.f32 %v219, %v208
    %v223 = vadd.f32 %v220, %v210
    %v224 = vadd.f32 %v221, %v213
    %v225 = vpack.c.bf16 %v223, %v222
    %v226 = vpack.c.bf16 %v224, %v224
    %v227 = vld [vmem:[#allocation7] sm:$0xf]
    %v228 = vld [vmem:[#allocation7 + $0x4] sm:$0xf]
    %v229 = vld [vmem:[#allocation7 + $0x8] sm:$0xf]
    %v230 = vld [vmem:[#allocation7 + $0xc] sm:$0xf]
    %v231 = vld [vmem:[#allocation9] sm:$0x1]
    %v233 = vperm.slane %v231, 0
    %v239 = vunpack.c.l.b16 %v227
    %v240 = vunpack.c.l.b16 %v228
    %v241 = vunpack.c.l.b16 %v229
    %v242 = vunpack.c.l.b16 %v230
    %v243 = vpack.c.b16 %v240, %v239
    %v244 = vpack.c.b16 %v242, %v241
    %vm247 = vcmask 261120
    %v249 = vsel %vm247, %v225, 0
    %v252 = vsel %vm247, %v226, 0
    %254 = vmatpush.bf16.msra.mxu0 0
    %255 = vmatpush.bf16.msra.mxu0 0
    %256 = vmatpush.bf16.msra.mxu0 0
    %257 = vmatpush.bf16.msra.mxu0 0
    %258 = vmatpush.bf16.msra.mxu0 0
    %259 = vmatpush.bf16.msra.mxu0 0
    %260 = vmatpush.bf16.msra.mxu0 %v244
    %261 = vmatpush.bf16.msra.mxu0 %v243
    %262 = vmatmul.bf16.gmra.mxu0 %v249
    %v263 = vpop.f32.mrf.mxu0
    %v264 = vadd.f32 %v233, %v263
    %v265 = vpop.f32.mrf.mxu0
    %v266 = vadd.f32 %v233, %v265
    %267 = vmatmul.bf16.gmra.mxu0 %v252
    %v268 = vpop.f32.mrf.mxu0
    %v269 = vadd.f32 %v233, %v268
    %v270 = vpop.f32.mrf.mxu0
    %271 = vdwg.mxu0
    %v272 = vmax.f32 %v264, 0.0
    %v273 = vmax.f32 %v266, 0.0
    %v274 = vmax.f32 %v269, 0.0
    %v275 = vpack.c.bf16 %v273, %v272
    %v276 = vpack.c.bf16 %v274, %v274
    %v277 = vld [vmem:[#allocation10] sm:$0xf]
    %v278 = vld [vmem:[#allocation10 + $0x4] sm:$0xf]
    %v279 = vld [vmem:[#allocation10 + $0x8] sm:$0xf]
    %v280 = vld [vmem:[#allocation10 + $0xc] sm:$0xf]
    %v281 = vld [vmem:[#allocation12] sm:$0x1]
    %v283 = vperm.slane %v281, 0
    %v289 = vunpack.c.l.b16 %v277
    %v290 = vunpack.c.l.b16 %v278
    %v291 = vunpack.c.l.b16 %v279
    %v292 = vunpack.c.l.b16 %v280
    %v293 = vpack.c.b16 %v290, %v289
    %v294 = vpack.c.b16 %v292, %v291
    %v298 = vsel %vm247, %v275, 0
    %v301 = vsel %vm247, %v276, 0
    %303 = vmatpush.bf16.msra.mxu0 0
    %304 = vmatpush.bf16.msra.mxu0 0
    %305 = vmatpush.bf16.msra.mxu0 0
    %306 = vmatpush.bf16.msra.mxu0 0
    %307 = vmatpush.bf16.msra.mxu0 0
    %308 = vmatpush.bf16.msra.mxu0 0
    %309 = vmatpush.bf16.msra.mxu0 %v294
    %310 = vmatpush.bf16.msra.mxu0 %v293
    %311 = vmatmul.bf16.gmra.mxu0 %v298
    %v312 = vpop.f32.mrf.mxu0
    %v313 = vadd.f32 %v283, %v312
    %v314 = vpop.f32.mrf.mxu0
    %v315 = vadd.f32 %v283, %v314
    %316 = vmatmul.bf16.gmra.mxu0 %v301
    %v317 = vpop.f32.mrf.mxu0
    %v318 = vadd.f32 %v283, %v317
    %v319 = vpop.f32.mrf.mxu0
    %320 = vdwg.mxu0
    %v321 = vmax.f32 %v313, 0.0
    %v322 = vmax.f32 %v315, 0.0
    %v323 = vmax.f32 %v318, 0.0
    %v324 = vpack.c.bf16 %v322, %v321
    %v325 = vpack.c.bf16 %v323, %v323
    %v326 = vld [vmem:[#allocation13] sm:$0xf]
    %v327 = vld [vmem:[#allocation13 + $0x4] sm:$0xf]
    %v328 = vld [vmem:[#allocation13 + $0x8] sm:$0xf]
    %v329 = vld [vmem:[#allocation13 + $0xc] sm:$0xf]
    %v331 = vsel %vm194, %v325, 0
    %333 = vmatpush.bf16.msra.mxu0 0
    %334 = vmatpush.bf16.msra.mxu0 0
    %335 = vmatpush.bf16.msra.mxu0 0
    %336 = vmatpush.bf16.msra.mxu0 0
    %337 = vmatpush.bf16.msra.mxu0 0
    %338 = vmatpush.bf16.msra.mxu0 0
    %339 = vmatpush.bf16.msra.mxu0 %v331
    %340 = vmatpush.bf16.msra.mxu0 %v324
    %341 = vmatmul.bf16.gmra.mxu0 %v189
    %v342 = vpop.f32.mrf.mxu0
    %v343 = vadd.f32 0.0, %v342
    %v344 = vpop.f32.mrf.mxu0
    %v345 = vadd.f32 0.0, %v344
    %346 = vmatmul.bf16.gmra.mxu0 %v192
    %v347 = vpop.f32.mrf.mxu0
    %v348 = vadd.f32 0.0, %v347
    %v349 = vpop.f32.mrf.mxu0
    %350 = vdwg.mxu0
    %s351 = sld [smem:[#allocation2 + $0x1]]
    %s352 = sadd.f32 %s351, 1.0
    %v353 = vstv %s352
    %v354 = vmul.f32 %v353, %v321
    %v355 = vmul.f32 %v353, %v322
    %v356 = vmul.f32 %v353, %v323
    %v357 = vadd.f32 %v354, %v343
    %v358 = vadd.f32 %v355, %v345
    %v359 = vadd.f32 %v356, %v348
    %v360 = vpack.c.bf16 %v358, %v357
    %v361 = vpack.c.bf16 %v359, %v359
    %s362 = scalar_lea.vmem [#allocation7], 16
    %v363 = vld [vmem:[%s362] sm:$0xf]
    %v364 = vld [vmem:[%s362 + $0x4] sm:$0xf]
    %v365 = vld [vmem:[%s362 + $0x8] sm:$0xf]
    %v366 = vld [vmem:[%s362 + $0xc] sm:$0xf]
    %s367 = scalar_lea.vmem [#allocation9], 1
    %v368 = vld [vmem:[%s367] sm:$0x1]
    %v370 = vperm.slane %v368, 0
    %v376 = vunpack.c.l.b16 %v363
    %v377 = vunpack.c.l.b16 %v364
    %v378 = vunpack.c.l.b16 %v365
    %v379 = vunpack.c.l.b16 %v366
    %v380 = vpack.c.b16 %v377, %v376
    %v381 = vpack.c.b16 %v379, %v378
    %v385 = vsel %vm247, %v360, 0
    %v388 = vsel %vm247, %v361, 0
    %390 = vmatpush.bf16.msra.mxu0 0
    %391 = vmatpush.bf16.msra.mxu0 0
    %392 = vmatpush.bf16.msra.mxu0 0
    %393 = vmatpush.bf16.msra.mxu0 0
    %394 = vmatpush.bf16.msra.mxu0 0
    %395 = vmatpush.bf16.msra.mxu0 0
    %396 = vmatpush.bf16.msra.mxu0 %v381
    %397 = vmatpush.bf16.msra.mxu0 %v380
    %398 = vmatmul.bf16.gmra.mxu0 %v385
    %v399 = vpop.f32.mrf.mxu0
    %v400 = vadd.f32 %v370, %v399
    %v401 = vpop.f32.mrf.mxu0
    %v402 = vadd.f32 %v370, %v401
    %403 = vmatmul.bf16.gmra.mxu0 %v388
    %v404 = vpop.f32.mrf.mxu0
    %v405 = vadd.f32 %v370, %v404
    %v406 = vpop.f32.mrf.mxu0
    %407 = vdwg.mxu0
    %v408 = vmax.f32 %v400, 0.0
    %v409 = vmax.f32 %v402, 0.0
    %v410 = vmax.f32 %v405, 0.0
    %v411 = vpack.c.bf16 %v409, %v408
    %v412 = vpack.c.bf16 %v410, %v410
    %s413 = scalar_lea.vmem [#allocation10], 16
    %v414 = vld [vmem:[%s413] sm:$0xf]
    %v415 = vld [vmem:[%s413 + $0x4] sm:$0xf]
    %v416 = vld [vmem:[%s413 + $0x8] sm:$0xf]
    %v417 = vld [vmem:[%s413 + $0xc] sm:$0xf]
    %s418 = scalar_lea.vmem [#allocation12], 1
    %v419 = vld [vmem:[%s418] sm:$0x1]
    %v421 = vperm.slane %v419, 0
    %v427 = vunpack.c.l.b16 %v414
    %v428 = vunpack.c.l.b16 %v415
    %v429 = vunpack.c.l.b16 %v416
    %v430 = vunpack.c.l.b16 %v417
    %v431 = vpack.c.b16 %v428, %v427
    %v432 = vpack.c.b16 %v430, %v429
    %v436 = vsel %vm247, %v411, 0
    %v439 = vsel %vm247, %v412, 0
    %441 = vmatpush.bf16.msra.mxu0 0
    %442 = vmatpush.bf16.msra.mxu0 0
    %443 = vmatpush.bf16.msra.mxu0 0
    %444 = vmatpush.bf16.msra.mxu0 0
    %445 = vmatpush.bf16.msra.mxu0 0
    %446 = vmatpush.bf16.msra.mxu0 0
    %447 = vmatpush.bf16.msra.mxu0 %v432
    %448 = vmatpush.bf16.msra.mxu0 %v431
    %449 = vmatmul.bf16.gmra.mxu0 %v436
    %v450 = vpop.f32.mrf.mxu0
    %v451 = vadd.f32 %v421, %v450
    %v452 = vpop.f32.mrf.mxu0
    %v453 = vadd.f32 %v421, %v452
    %454 = vmatmul.bf16.gmra.mxu0 %v439
    %v455 = vpop.f32.mrf.mxu0
    %v456 = vadd.f32 %v421, %v455
    %v457 = vpop.f32.mrf.mxu0
    %458 = vdwg.mxu0
    %v459 = vmax.f32 %v451, 0.0
    %v460 = vmax.f32 %v453, 0.0
    %v461 = vmax.f32 %v456, 0.0
    %v462 = vpack.c.bf16 %v460, %v459
    %v463 = vpack.c.bf16 %v461, %v461
    %s464 = scalar_lea.vmem [#allocation13], 16
    %v465 = vld [vmem:[%s464] sm:$0xf]
    %v466 = vld [vmem:[%s464 + $0x4] sm:$0xf]
    %v467 = vld [vmem:[%s464 + $0x8] sm:$0xf]
    %v468 = vld [vmem:[%s464 + $0xc] sm:$0xf]
    %v473 = vunpack.c.l.b16 %v465
    %v474 = vunpack.c.l.b16 %v466
    %v475 = vunpack.c.l.b16 %v467
    %v476 = vunpack.c.l.b16 %v468
    %v477 = vpack.c.b16 %v474, %v473
    %v478 = vpack.c.b16 %v476, %v475
    %v482 = vsel %vm247, %v462, 0
    %v485 = vsel %vm247, %v463, 0
    %487 = vmatpush.bf16.msra.mxu0 0
    %488 = vmatpush.bf16.msra.mxu0 0
    %489 = vmatpush.bf16.msra.mxu0 0
    %490 = vmatpush.bf16.msra.mxu0 0
    %491 = vmatpush.bf16.msra.mxu0 0
    %492 = vmatpush.bf16.msra.mxu0 0
    %493 = vmatpush.bf16.msra.mxu0 %v478
    %494 = vmatpush.bf16.msra.mxu0 %v477
    %495 = vmatmul.bf16.gmra.mxu0 %v482
    %v496 = vpop.f32.mrf.mxu0
    %v497 = vadd.f32 0.0, %v496
    %v498 = vpop.f32.mrf.mxu0
    %v499 = vadd.f32 0.0, %v498
    %500 = vmatmul.bf16.gmra.mxu0 %v485
    %v501 = vpop.f32.mrf.mxu0
    %v502 = vadd.f32 0.0, %v501
    %v503 = vpop.f32.mrf.mxu0
    %504 = vdwg.mxu0
    %v509 = vunpack.c.l.b16 %v326
    %v510 = vunpack.c.l.b16 %v327
    %v511 = vunpack.c.l.b16 %v328
    %v512 = vunpack.c.l.b16 %v329
    %v513 = vpack.c.b16 %v510, %v509
    %v514 = vpack.c.b16 %v512, %v511
    %v518 = vsel %vm247, %v324, 0
    %v520 = vsel %vm247, %v325, 0
    %522 = vmatpush.bf16.msra.mxu0 0
    %523 = vmatpush.bf16.msra.mxu0 0
    %524 = vmatpush.bf16.msra.mxu0 0
    %525 = vmatpush.bf16.msra.mxu0 0
    %526 = vmatpush.bf16.msra.mxu0 0
    %527 = vmatpush.bf16.msra.mxu0 0
    %528 = vmatpush.bf16.msra.mxu0 %v514
    %529 = vmatpush.bf16.msra.mxu0 %v513
    %530 = vmatmul.bf16.gmra.mxu0 %v518
    %v531 = vpop.f32.mrf.mxu0
    %v532 = vadd.f32 %v497, %v531
    %v533 = vpop.f32.mrf.mxu0
    %v534 = vadd.f32 %v499, %v533
    %535 = vmatmul.bf16.gmra.mxu0 %v520
    %v536 = vpop.f32.mrf.mxu0
    %v537 = vadd.f32 %v502, %v536
    %v538 = vpop.f32.mrf.mxu0
    %539 = vdwg.mxu0
    %v540 = vsel %vm194, %v463, 0
    %542 = vmatpush.bf16.msra.mxu0 0
    %543 = vmatpush.bf16.msra.mxu0 0
    %544 = vmatpush.bf16.msra.mxu0 0
    %545 = vmatpush.bf16.msra.mxu0 0
    %546 = vmatpush.bf16.msra.mxu0 0
    %547 = vmatpush.bf16.msra.mxu0 0
    %548 = vmatpush.bf16.msra.mxu0 %v540
    %549 = vmatpush.bf16.msra.mxu0 %v462
    %550 = vmatmul.bf16.gmra.mxu0 %v189
    %v551 = vpop.f32.mrf.mxu0
    %v552 = vadd.f32 0.0, %v551
    %v553 = vpop.f32.mrf.mxu0
    %v554 = vadd.f32 0.0, %v553
    %555 = vmatmul.bf16.gmra.mxu0 %v192
    %v556 = vpop.f32.mrf.mxu0
    %v557 = vadd.f32 0.0, %v556
    %v558 = vpop.f32.mrf.mxu0
    %559 = vdwg.mxu0
    %s560 = sld [smem:[#allocation2 + $0x2]]
    %s561 = sadd.f32 %s560, 1.0
    %v562 = vstv %s561
    %v563 = vmul.f32 %v562, %v459
    %v564 = vmul.f32 %v562, %v460
    %v565 = vmul.f32 %v562, %v461
    %v566 = vadd.f32 %v563, %v552
    %v567 = vadd.f32 %v564, %v554
    %v568 = vadd.f32 %v565, %v557
    %v569 = vpack.c.bf16 %v567, %v566
    %v570 = vpack.c.bf16 %v568, %v568
    %s571 = scalar_lea.vmem [#allocation7], 32
    %v572 = vld [vmem:[%s571] sm:$0xf]
    %v573 = vld [vmem:[%s571 + $0x4] sm:$0xf]
    %v574 = vld [vmem:[%s571 + $0x8] sm:$0xf]
    %v575 = vld [vmem:[%s571 + $0xc] sm:$0xf]
    %s576 = scalar_lea.vmem [#allocation9], 2
    %v577 = vld [vmem:[%s576] sm:$0x1]
    %v579 = vperm.slane %v577, 0
    %v585 = vunpack.c.l.b16 %v572
    %v586 = vunpack.c.l.b16 %v573
    %v587 = vunpack.c.l.b16 %v574
    %v588 = vunpack.c.l.b16 %v575
    %v589 = vpack.c.b16 %v586, %v585
    %v590 = vpack.c.b16 %v588, %v587
    %v594 = vsel %vm247, %v569, 0
    %v597 = vsel %vm247, %v570, 0
    %599 = vmatpush.bf16.msra.mxu0 0
    %600 = vmatpush.bf16.msra.mxu0 0
    %601 = vmatpush.bf16.msra.mxu0 0
    %602 = vmatpush.bf16.msra.mxu0 0
    %603 = vmatpush.bf16.msra.mxu0 0
    %604 = vmatpush.bf16.msra.mxu0 0
    %605 = vmatpush.bf16.msra.mxu0 %v590
    %606 = vmatpush.bf16.msra.mxu0 %v589
    %607 = vmatmul.bf16.gmra.mxu0 %v594
    %v608 = vpop.f32.mrf.mxu0
    %v609 = vadd.f32 %v579, %v608
    %v610 = vpop.f32.mrf.mxu0
    %v611 = vadd.f32 %v579, %v610
    %612 = vmatmul.bf16.gmra.mxu0 %v597
    %v613 = vpop.f32.mrf.mxu0
    %v614 = vadd.f32 %v579, %v613
    %v615 = vpop.f32.mrf.mxu0
    %616 = vdwg.mxu0
    %v617 = vmax.f32 %v609, 0.0
    %v618 = vmax.f32 %v611, 0.0
    %v619 = vmax.f32 %v614, 0.0
    %v620 = vpack.c.bf16 %v618, %v617
    %v621 = vpack.c.bf16 %v619, %v619
    %s622 = scalar_lea.vmem [#allocation10], 32
    %v623 = vld [vmem:[%s622] sm:$0xf]
    %v624 = vld [vmem:[%s622 + $0x4] sm:$0xf]
    %v625 = vld [vmem:[%s622 + $0x8] sm:$0xf]
    %v626 = vld [vmem:[%s622 + $0xc] sm:$0xf]
    %s627 = scalar_lea.vmem [#allocation12], 2
    %v628 = vld [vmem:[%s627] sm:$0x1]
    %v630 = vperm.slane %v628, 0
    %v636 = vunpack.c.l.b16 %v623
    %v637 = vunpack.c.l.b16 %v624
    %v638 = vunpack.c.l.b16 %v625
    %v639 = vunpack.c.l.b16 %v626
    %v640 = vpack.c.b16 %v637, %v636
    %v641 = vpack.c.b16 %v639, %v638
    %v645 = vsel %vm247, %v620, 0
    %v648 = vsel %vm247, %v621, 0
    %650 = vmatpush.bf16.msra.mxu0 0
    %651 = vmatpush.bf16.msra.mxu0 0
    %652 = vmatpush.bf16.msra.mxu0 0
    %653 = vmatpush.bf16.msra.mxu0 0
    %654 = vmatpush.bf16.msra.mxu0 0
    %655 = vmatpush.bf16.msra.mxu0 0
    %656 = vmatpush.bf16.msra.mxu0 %v641
    %657 = vmatpush.bf16.msra.mxu0 %v640
    %658 = vmatmul.bf16.gmra.mxu0 %v645
    %v659 = vpop.f32.mrf.mxu0
    %v660 = vadd.f32 %v630, %v659
    %v661 = vpop.f32.mrf.mxu0
    %v662 = vadd.f32 %v630, %v661
    %663 = vmatmul.bf16.gmra.mxu0 %v648
    %v664 = vpop.f32.mrf.mxu0
    %v665 = vadd.f32 %v630, %v664
    %v666 = vpop.f32.mrf.mxu0
    %667 = vdwg.mxu0
    %v668 = vmax.f32 %v660, 0.0
    %v669 = vmax.f32 %v662, 0.0
    %v670 = vmax.f32 %v665, 0.0
    %v671 = vpack.c.bf16 %v669, %v668
    %v672 = vpack.c.bf16 %v670, %v670
    %s673 = scalar_lea.vmem [#allocation13], 32
    %v674 = vld [vmem:[%s673] sm:$0xf]
    %v675 = vld [vmem:[%s673 + $0x4] sm:$0xf]
    %v676 = vld [vmem:[%s673 + $0x8] sm:$0xf]
    %v677 = vld [vmem:[%s673 + $0xc] sm:$0xf]
    %v682 = vunpack.c.l.b16 %v674
    %v683 = vunpack.c.l.b16 %v675
    %v684 = vunpack.c.l.b16 %v676
    %v685 = vunpack.c.l.b16 %v677
    %v686 = vpack.c.b16 %v683, %v682
    %v687 = vpack.c.b16 %v685, %v684
    %v691 = vsel %vm247, %v671, 0
    %v694 = vsel %vm247, %v672, 0
    %696 = vmatpush.bf16.msra.mxu0 0
    %697 = vmatpush.bf16.msra.mxu0 0
    %698 = vmatpush.bf16.msra.mxu0 0
    %699 = vmatpush.bf16.msra.mxu0 0
    %700 = vmatpush.bf16.msra.mxu0 0
    %701 = vmatpush.bf16.msra.mxu0 0
    %702 = vmatpush.bf16.msra.mxu0 %v687
    %703 = vmatpush.bf16.msra.mxu0 %v686
    %704 = vmatmul.bf16.gmra.mxu0 %v691
    %v705 = vpop.f32.mrf.mxu0
    %v706 = vadd.f32 0.0, %v705
    %v707 = vpop.f32.mrf.mxu0
    %v708 = vadd.f32 0.0, %v707
    %709 = vmatmul.bf16.gmra.mxu0 %v694
    %v710 = vpop.f32.mrf.mxu0
    %v711 = vadd.f32 0.0, %v710
    %v712 = vpop.f32.mrf.mxu0
    %713 = vdwg.mxu0
    %v714 = vadd.f32 %v532, %v706
    %v715 = vadd.f32 %v534, %v708
    %v716 = vadd.f32 %v537, %v711
    %v717 = vsel %vm194, %v672, 0
    %719 = vmatpush.bf16.msra.mxu0 0
    %720 = vmatpush.bf16.msra.mxu0 0
    %721 = vmatpush.bf16.msra.mxu0 0
    %722 = vmatpush.bf16.msra.mxu0 0
    %723 = vmatpush.bf16.msra.mxu0 0
    %724 = vmatpush.bf16.msra.mxu0 0
    %725 = vmatpush.bf16.msra.mxu0 %v717
    %726 = vmatpush.bf16.msra.mxu0 %v671
    %727 = vmatmul.bf16.gmra.mxu0 %v189
    %v728 = vpop.f32.mrf.mxu0
    %v729 = vadd.f32 0.0, %v728
    %v730 = vpop.f32.mrf.mxu0
    %v731 = vadd.f32 0.0, %v730
    %732 = vmatmul.bf16.gmra.mxu0 %v192
    %v733 = vpop.f32.mrf.mxu0
    %v734 = vadd.f32 0.0, %v733
    %v735 = vpop.f32.mrf.mxu0
    %736 = vdwg.mxu0
    %s737 = sld [smem:[#allocation2 + $0x3]]
    %s738 = sadd.f32 %s737, 1.0
    %v739 = vstv %s738
    %v740 = vmul.f32 %v739, %v668
    %v741 = vmul.f32 %v739, %v669
    %v742 = vmul.f32 %v739, %v670
    %v743 = vadd.f32 %v740, %v729
    %v744 = vadd.f32 %v741, %v731
    %v745 = vadd.f32 %v742, %v734
    %v746 = vpack.c.bf16 %v744, %v743
    %v747 = vpack.c.bf16 %v745, %v745
    %s748 = scalar_lea.vmem [#allocation7], 48
    %v749 = vld [vmem:[%s748] sm:$0xf]
    %v750 = vld [vmem:[%s748 + $0x4] sm:$0xf]
    %v751 = vld [vmem:[%s748 + $0x8] sm:$0xf]
    %v752 = vld [vmem:[%s748 + $0xc] sm:$0xf]
    %s753 = scalar_lea.vmem [#allocation9], 3
    %v754 = vld [vmem:[%s753] sm:$0x1]
    %v756 = vperm.slane %v754, 0
    %v762 = vunpack.c.l.b16 %v749
    %v763 = vunpack.c.l.b16 %v750
    %v764 = vunpack.c.l.b16 %v751
    %v765 = vunpack.c.l.b16 %v752
    %v766 = vpack.c.b16 %v763, %v762
    %v767 = vpack.c.b16 %v765, %v764
    %v771 = vsel %vm247, %v746, 0
    %v774 = vsel %vm247, %v747, 0
    %776 = vmatpush.bf16.msra.mxu0 0
    %777 = vmatpush.bf16.msra.mxu0 0
    %778 = vmatpush.bf16.msra.mxu0 0
    %779 = vmatpush.bf16.msra.mxu0 0
    %780 = vmatpush.bf16.msra.mxu0 0
    %781 = vmatpush.bf16.msra.mxu0 0
    %782 = vmatpush.bf16.msra.mxu0 %v767
    %783 = vmatpush.bf16.msra.mxu0 %v766
    %784 = vmatmul.bf16.gmra.mxu0 %v771
    %v785 = vpop.f32.mrf.mxu0
    %v786 = vadd.f32 %v756, %v785
    %v787 = vpop.f32.mrf.mxu0
    %v788 = vadd.f32 %v756, %v787
    %789 = vmatmul.bf16.gmra.mxu0 %v774
    %v790 = vpop.f32.mrf.mxu0
    %v791 = vadd.f32 %v756, %v790
    %v792 = vpop.f32.mrf.mxu0
    %793 = vdwg.mxu0
    %v794 = vmax.f32 %v786, 0.0
    %v795 = vmax.f32 %v788, 0.0
    %v796 = vmax.f32 %v791, 0.0
    %v797 = vpack.c.bf16 %v795, %v794
    %v798 = vpack.c.bf16 %v796, %v796
    %s799 = scalar_lea.vmem [#allocation10], 48
    %v800 = vld [vmem:[%s799] sm:$0xf]
    %v801 = vld [vmem:[%s799 + $0x4] sm:$0xf]
    %v802 = vld [vmem:[%s799 + $0x8] sm:$0xf]
    %v803 = vld [vmem:[%s799 + $0xc] sm:$0xf]
    %s804 = scalar_lea.vmem [#allocation12], 3
    %v805 = vld [vmem:[%s804] sm:$0x1]
    %v807 = vperm.slane %v805, 0
    %v813 = vunpack.c.l.b16 %v800
    %v814 = vunpack.c.l.b16 %v801
    %v815 = vunpack.c.l.b16 %v802
    %v816 = vunpack.c.l.b16 %v803
    %v817 = vpack.c.b16 %v814, %v813
    %v818 = vpack.c.b16 %v816, %v815
    %v822 = vsel %vm247, %v797, 0
    %v825 = vsel %vm247, %v798, 0
    %827 = vmatpush.bf16.msra.mxu0 0
    %828 = vmatpush.bf16.msra.mxu0 0
    %829 = vmatpush.bf16.msra.mxu0 0
    %830 = vmatpush.bf16.msra.mxu0 0
    %831 = vmatpush.bf16.msra.mxu0 0
    %832 = vmatpush.bf16.msra.mxu0 0
    %833 = vmatpush.bf16.msra.mxu0 %v818
    %834 = vmatpush.bf16.msra.mxu0 %v817
    %835 = vmatmul.bf16.gmra.mxu0 %v822
    %v836 = vpop.f32.mrf.mxu0
    %v837 = vadd.f32 %v807, %v836
    %v838 = vpop.f32.mrf.mxu0
    %v839 = vadd.f32 %v807, %v838
    %840 = vmatmul.bf16.gmra.mxu0 %v825
    %v841 = vpop.f32.mrf.mxu0
    %v842 = vadd.f32 %v807, %v841
    %v843 = vpop.f32.mrf.mxu0
    %844 = vdwg.mxu0
    %v845 = vmax.f32 %v837, 0.0
    %v846 = vmax.f32 %v839, 0.0
    %v847 = vmax.f32 %v842, 0.0
    %v848 = vpack.c.bf16 %v846, %v845
    %v849 = vpack.c.bf16 %v847, %v847
    %s850 = scalar_lea.vmem [#allocation13], 48
    %v851 = vld [vmem:[%s850] sm:$0xf]
    %v852 = vld [vmem:[%s850 + $0x4] sm:$0xf]
    %v853 = vld [vmem:[%s850 + $0x8] sm:$0xf]
    %v854 = vld [vmem:[%s850 + $0xc] sm:$0xf]
    %v859 = vunpack.c.l.b16 %v851
    %v860 = vunpack.c.l.b16 %v852
    %v861 = vunpack.c.l.b16 %v853
    %v862 = vunpack.c.l.b16 %v854
    %v863 = vpack.c.b16 %v860, %v859
    %v864 = vpack.c.b16 %v862, %v861
    %v868 = vsel %vm247, %v848, 0
    %v871 = vsel %vm247, %v849, 0
    %873 = vmatpush.bf16.msra.mxu0 0
    %874 = vmatpush.bf16.msra.mxu0 0
    %875 = vmatpush.bf16.msra.mxu0 0
    %876 = vmatpush.bf16.msra.mxu0 0
    %877 = vmatpush.bf16.msra.mxu0 0
    %878 = vmatpush.bf16.msra.mxu0 0
    %879 = vmatpush.bf16.msra.mxu0 %v864
    %880 = vmatpush.bf16.msra.mxu0 %v863
    %881 = vmatmul.bf16.gmra.mxu0 %v868
    %v882 = vpop.f32.mrf.mxu0
    %v883 = vadd.f32 0.0, %v882
    %v884 = vpop.f32.mrf.mxu0
    %v885 = vadd.f32 0.0, %v884
    %886 = vmatmul.bf16.gmra.mxu0 %v871
    %v887 = vpop.f32.mrf.mxu0
    %v888 = vadd.f32 0.0, %v887
    %v889 = vpop.f32.mrf.mxu0
    %890 = vdwg.mxu0
    %v891 = vadd.f32 %v714, %v883
    %v892 = vadd.f32 %v715, %v885
    %v893 = vadd.f32 %v716, %v888
    %v894 = vld [vmem:[%s8] sm:$0x1]
    %v896 = vperm.slane %v894, 0
    %v898 = vadd.f32 %v891, %v896
    %v899 = vadd.f32 %v892, %v896
    %v900 = vadd.f32 %v893, %v896
    %v901 = vmax.f32 %v898, 0.0
    %v902 = vmax.f32 %v899, 0.0
    %v903 = vmax.f32 %v900, 0.0
    %v904 = vld [vmem:[%s9] sm:$0x1]
    %v906 = vperm.slane %v904, 0
    %v908 = vmul.f32 %v901, %v906
    %v909 = vmul.f32 %v902, %v906
    %v910 = vmul.f32 %v903, %v906
    %v911 = vsel %vm247, %v908, 0.0
    %912 = vadd.xlane.f32.xlu0 %v911
    %v913 = vpop.xlane.xlu0 %912
    %v914 = vsel %vm247, %v909, 0.0
    %915 = vadd.xlane.f32.xlu0 %v914
    %v916 = vpop.xlane.xlu0 %915
    %v917 = vsel %vm247, %v910, 0.0
    %918 = vadd.xlane.f32.xlu0 %v917
    %v919 = vpop.xlane.xlu0 %918
    %s920 = sld [smem:[#allocation2 + $0x4]]
    %v921 = vstv %s920
    %v922 = vadd.f32 %v913, %v921
    %v923 = vadd.f32 %v916, %v921
    %v924 = vadd.f32 %v919, %v921
    %v925 = vmax.f32 %v922, %v923
    %v926 = vmax.f32 %v925, %v924
    %v927 = vrot.slane %v926, 4
    %v928 = vmax.f32 %v926, %v927
    %v929 = vrot.slane %v928, 2
    %v930 = vmax.f32 %v928, %v929
    %v931 = vrot.slane %v930, 1
    %v932 = vmax.f32 %v930, %v931
    %v933 = vsub.f32 %v922, %v932
    %v934 = vsub.f32 %v923, %v932
    %v935 = vsub.f32 %v924, %v932
    %v936 = vmul.f32 %v933, 1.442695
    %v937 = vpow.pop %v936
    %v938 = vmul.f32 %v934, 1.442695
    %v939 = vpow.pop %v938
    %v940 = vmul.f32 %v935, 1.442695
    %v941 = vpow.pop %v940
    %v942 = vld [vmem:[%s10] sm:$0x3]
    %v944 = vsel %vm187, %v942, 0
    %946 = vmatpush.msra.mxu0 0.0
    %947 = vmatpush.msra.mxu0 0.0
    %948 = vmatpush.msra.mxu0 0.0
    %949 = vmatpush.msra.mxu0 0.0
    %950 = vmatpush.msra.mxu0 0.0
    %951 = vmatpush.msra.mxu0 0.0
    %952 = vmatpush.msra.mxu0 0.0
    %953 = vmatpush.msra.mxu0 0.0
    %954 = vmatpush.msra.mxu0 0.0
    %955 = vmatpush.msra.mxu0 0.0
    %956 = vmatpush.msra.mxu0 0.0
    %957 = vmatpush.msra.mxu0 0.0
    %958 = vmatpush.msra.mxu0 0.0
    %959 = vmatpush.msra.mxu0 %v941
    %960 = vmatpush.msra.mxu0 %v939
    %961 = vmatpush.msra.mxu0 %v937
    %962 = vmatmul.f32.gmra.mxu0 %v944
    %v963 = vpop.f32.mrf.mxu0
    %v964 = vadd.f32 0.0, %v963
    %965 = vdwg.mxu0
    %v966 = vld [vmem:[%s11] sm:$0xff]
    %v967 = vld [vmem:[%s11 + $0x8] sm:$0xff]
    %v968 = vld [vmem:[%s11 + $0x10] sm:$0xff]
    %vm969 = vcmask 15360
    %v971 = vsel %vm969, %v966, 0
    %v974 = vsel %vm969, %v967, 0
    %v977 = vsel %vm969, %v968, 0
    %vm979 = vcmask 1041408
    %v981 = vsel %vm979, %v964, 0
    %983 = vmatpush.msra.mxu0 0.0
    %984 = vmatpush.msra.mxu0 0.0
    %985 = vmatpush.msra.mxu0 0.0
    %986 = vmatpush.msra.mxu0 0.0
    %987 = vmatpush.msra.mxu0 0.0
    %988 = vmatpush.msra.mxu0 0.0
    %989 = vmatpush.msra.mxu0 0.0
    %990 = vmatpush.msra.mxu0 0.0
    %991 = vmatpush.msra.mxu0 0.0
    %992 = vmatpush.msra.mxu0 0.0
    %993 = vmatpush.msra.mxu0 0.0
    %994 = vmatpush.msra.mxu0 0.0
    %995 = vmatpush.msra.mxu0 0.0
    %996 = vmatpush.msra.mxu0 0.0
    %997 = vmatpush.msra.mxu0 0.0
    %998 = vmatpush.msra.mxu0 %v981
    %999 = vmatmul.f32.gmra.mxu0 %v971
    %v1000 = vpop.f32.mrf.mxu0
    %v1001 = vadd.f32 0.0, %v1000
    %1002 = vmatmul.f32.gmra.mxu0 %v974
    %v1003 = vpop.f32.mrf.mxu0
    %v1004 = vadd.f32 0.0, %v1003
    %1005 = vmatmul.f32.gmra.mxu0 %v977
    %v1006 = vpop.f32.mrf.mxu0
    %v1007 = vadd.f32 0.0, %v1006
    %1008 = vdwg.mxu0
    %v1009 = vrcp.pop %v1001
    %v1010 = vmul.f32 %v1001, %v1009
    %v1011 = vsub.f32 1.0, %v1010
    %v1012 = vmul.f32 %v1009, %v1011
    %v1013 = vadd.f32 %v1009, %v1012
    %vm1014 = vweird.f32 %v1001
    %vm1015 = vweird.f32 %v1009
    %vm1016 = vmor %vm1014, %vm1015
    %v1017 = vsel %vm1016, %v1009, %v1013
    %v1018 = vand.u32 2147483647, %v1001
    %vm1019 = vcmp.eq.f32.partialorder %v1018, 8.507059e+37
    %v1020 = vand.u32 %v1001, 2147483648
    %v1021 = vor.u32 1.1754944e-38, %v1020
    %v1022 = vsel %vm1019, %v1021, %v1017
    %v1023 = vmul.f32 %v937, %v1022
    %v1024 = vrcp.pop %v1004
    %v1025 = vmul.f32 %v1004, %v1024
    %v1026 = vsub.f32 1.0, %v1025
    %v1027 = vmul.f32 %v1024, %v1026
    %v1028 = vadd.f32 %v1024, %v1027
    %vm1029 = vweird.f32 %v1004
    %vm1030 = vweird.f32 %v1024
    %vm1031 = vmor %vm1029, %vm1030
    %v1032 = vsel %vm1031, %v1024, %v1028
    %v1033 = vand.u32 2147483647, %v1004
    %vm1034 = vcmp.eq.f32.partialorder %v1033, 8.507059e+37
    %v1035 = vand.u32 %v1004, 2147483648
    %v1036 = vor.u32 1.1754944e-38, %v1035
    %v1037 = vsel %vm1034, %v1036, %v1032
    %v1038 = vmul.f32 %v939, %v1037
    %v1039 = vrcp.pop %v1007
    %v1040 = vmul.f32 %v1007, %v1039
    %v1041 = vsub.f32 1.0, %v1040
    %v1042 = vmul.f32 %v1039, %v1041
    %v1043 = vadd.f32 %v1039, %v1042
    %vm1044 = vweird.f32 %v1007
    %vm1045 = vweird.f32 %v1039
    %vm1046 = vmor %vm1044, %vm1045
    %v1047 = vsel %vm1046, %v1039, %v1043
    %v1048 = vand.u32 2147483647, %v1007
    %vm1049 = vcmp.eq.f32.partialorder %v1048, 8.507059e+37
    %v1050 = vand.u32 %v1007, 2147483648
    %v1051 = vor.u32 1.1754944e-38, %v1050
    %v1052 = vsel %vm1049, %v1051, %v1047
    %v1053 = vmul.f32 %v941, %v1052
    %1055 = vset.pattern.permute.xlu0 0
    %1056 = vperm.xlu0 %1055, %v1023
    %v1057 = vpop.permute.xlu0 %1056
    %1060 = vset.pattern.permute.xlu0 0
    %1061 = vperm.xlu0 %1060, %v1038
    %v1062 = vpop.permute.xlu0 %1061
    %1065 = vset.pattern.permute.xlu0 0
    %1066 = vperm.xlu0 %1065, %v1053
    %v1067 = vpop.permute.xlu0 %1066
    %v1069 = vmul.f32 %v1057, %v901
    %v1070 = vmul.f32 %v1062, %v902
    %v1071 = vmul.f32 %v1067, %v903
    %1072 = vmatpush.msra.mxu0 0.0
    %1073 = vmatpush.msra.mxu0 0.0
    %1074 = vmatpush.msra.mxu0 0.0
    %1075 = vmatpush.msra.mxu0 0.0
    %1076 = vmatpush.msra.mxu0 0.0
    %1077 = vmatpush.msra.mxu0 0.0
    %1078 = vmatpush.msra.mxu0 0.0
    %1079 = vmatpush.msra.mxu0 0.0
    %1080 = vmatpush.msra.mxu0 0.0
    %1081 = vmatpush.msra.mxu0 0.0
    %1082 = vmatpush.msra.mxu0 0.0
    %1083 = vmatpush.msra.mxu0 0.0
    %1084 = vmatpush.msra.mxu0 0.0
    %1085 = vmatpush.msra.mxu0 %v1071
    %1086 = vmatpush.msra.mxu0 %v1070
    %1087 = vmatpush.msra.mxu0 %v1069
    %1088 = vmatmul.f32.gmra.mxu0 %v944
    %v1089 = vpop.f32.mrf.mxu0
    %v1090 = vadd.f32 0.0, %v1089
    %1091 = vdwg.mxu0
    %v1092 = vld [vmem:[#allocation15] sm:$0xff]
    %v1093 = vld [vmem:[#allocation15 + $0x8] sm:$0xff]
    %v1094 = vld [vmem:[#allocation15 + $0x10] sm:$0xff]
    %v1095 = vld [vmem:[#allocation15 + $0x18] sm:$0xff]
    %v1096 = vld [vmem:[%s13] sm:$0x1]
    %v1098 = vperm.slane %v1096, 0
    %v1101 = vsel %vm247, %v1090, 0
    %1103 = vmatpush.msra.mxu0 0.0
    %1104 = vmatpush.msra.mxu0 0.0
    %1105 = vmatpush.msra.mxu0 0.0
    %1106 = vmatpush.msra.mxu0 0.0
    %1107 = vmatpush.msra.mxu0 0.0
    %1108 = vmatpush.msra.mxu0 0.0
    %1109 = vmatpush.msra.mxu0 0.0
    %1110 = vmatpush.msra.mxu0 0.0
    %1111 = vmatpush.msra.mxu0 0.0
    %1112 = vmatpush.msra.mxu0 0.0
    %1113 = vmatpush.msra.mxu0 0.0
    %1114 = vmatpush.msra.mxu0 0.0
    %1115 = vmatpush.msra.mxu0 %v1095
    %1116 = vmatpush.msra.mxu0 %v1094
    %1117 = vmatpush.msra.mxu0 %v1093
    %1118 = vmatpush.msra.mxu0 %v1092
    %1119 = vmatmul.f32.gmra.mxu0 %v1101
    %v1120 = vpop.f32.mrf.mxu0
    %v1121 = vadd.f32 %v1098, %v1120
    %1122 = vdwg.mxu0
    %1123 = vst [vmem:[#allocation16] sm:$0x3] %v1121
    // Predicated region
    $region90: #{tpu_custom_call.1} parent=1 // pred_check
      _
    $region91: #{tpu_custom_call.1} parent=1 // pred_check_branch
      %1125 = sbr.rel (0) target = $region93
    $region92: #{tpu_custom_call.1} parent=1 // pred_region
      %1127 = vsyncadd [#allocation4], 0
      %s1129 = sshll.u32 [#allocation16], 4
      %s1130 = int_to_ptr.vmem [resolvable:$true] %s1129
      %s1131 = sshll.u32 %s14, 4
      %s1132 = int_to_ptr.hbm [resolvable:$true] %s1131
      %1134 = dma.vmem_to_hbm [thread:$0]  %s1130, 32, %s1132, [#allocation4]
    $region93: #{tpu_custom_call.1} parent=1 // pred_fallthru
      _
    // Predicated region
    $region94: #{tpu_custom_call.1} parent=1 // pred_check
      _
    $region95: #{tpu_custom_call.1} parent=1 // pred_check_branch
      %1136 = sbr.rel (0) target = $region97
    $region96: #{tpu_custom_call.1} parent=1 // pred_region
      %1138 = dma.done [#allocation4], 32
    $region97: #{tpu_custom_call.1} parent=1 // pred_fallthru
      _
    %1139 = vsyncpa [#allocation3], 1
    %1140 = vsyncpa [#allocation8], 1
    %1141 = vsyncpa [#allocation11], 1
    %1142 = vsyncpa [#allocation14], 1
    %1143 = vsyncpa [#allocation4], 1
    %1144 = vsyncpa [#allocation5], 1

</llo_original>
